<compile_context>
chip_gen: v7x
topology: tpu7x:2x2x1
jax: 0.10.0
libtpu: 0.0.40
codegen_flags: <defaults>
</compile_context>

<pallas_src>
import functools
import math

import jax
import jax.numpy as jnp
from jax.experimental import pallas as pl
from jax.experimental.pallas import tpu as pltpu

# ----- stand-ins for `const.*` in the reference module -----
DEPTH = 3
NUM_CHANNELS = 32
TOP_K_POOLING = 0.5
DROPOUT = 0.5                 # TODO(synk): training-mode dropout randomness not reproduced (eval mode)
NUM_NODE_FEATURES = 16
NUM_CLASSES = 8
NUM_NODES = 64

LANE = 128                    # channel dims zero-padded to 128 lanes (lane-dense stores, full MXU columns)
MXU_DTYPE = jnp.float32       # flip to jnp.bfloat16 for production (adj/weights are pre-cast; loosen test tol)


# ---------------------------------------------------------------------------
# In-kernel building block
# ---------------------------------------------------------------------------
def _gcn_norm_conv(adj, xin, w, b, m_col, m_row):
    """GCNConv(improved=True) on the mask-m subgraph of `adj`.

    out = D^{-1/2} (A_m + 2I) D^{-1/2} (xin @ W) + b,  A_m = m mᵀ ⊙ A.
    A_m is never materialized: the thin [N, C] XW factor is masked/scaled on both
    sides instead, leaving the dense A @ (...) matmul as the only O(N²) op.
    """
    adj_f = adj.astype(jnp.float32)
    deg = m_col * jnp.sum(adj_f * m_row, axis=1, keepdims=True) + 2.0     # ≥ 2 → rsqrt safe
    d = jax.lax.rsqrt(deg)                                                # (N, 1)
    xw = jnp.dot(xin.astype(MXU_DTYPE), w, preferred_element_type=jnp.float32)   # (N, C)
    z = (m_col * d) * xw
    agg = jnp.dot(adj, z.astype(MXU_DTYPE), preferred_element_type=jnp.float32)  # MXU: (N,N)@(N,C)
    return (m_col * d) * agg + (2.0 * d * d) * xw + b


# ---------------------------------------------------------------------------
# Fully fused Graph U-Net kernel: grid step i is
#   i in [0, DEPTH)      : encoder level i  (conv + ReLU + in-kernel TopK pooling)
#   i == DEPTH           : deepest encoder conv (conv + ReLU)
#   i in (DEPTH, 2*DEPTH]: decoder level    (unpool + skip-add + conv + ReLU / log_softmax)
# ---------------------------------------------------------------------------
def _graph_unet_kernel(adj_ref, x0_ref, w_ref, b_ref, p_ref,
                       out_ref,
                       x_carry, res_carry, mcol_carry, mrow_carry,
                       *, depth, num_classes, ks):
    i = pl.program_id(0)
    n = adj_ref.shape[0]

    # ---- one-time init (step 0): load input features, level-0 mask = all nodes active.
    @pl.when(i == 0)
    def _():
        x_carry[...] = x0_ref[...]
        res_carry[...] = jnp.zeros_like(res_carry)
        mcol_carry[...] = jnp.zeros_like(mcol_carry)
        mrow_carry[...] = jnp.zeros_like(mrow_carry)
        mcol_carry[0] = jnp.ones((n, 1), jnp.float32)
        mrow_carry[0] = jnp.ones((1, n), jnp.float32)

    # ---- which mask level this step operates on (encoder/deepest: i, decoder: 2*depth - i).
    is_dec = i > depth
    cur = jnp.where(is_dec, 2 * depth - i, i)
    m_col = mcol_carry[cur]                       # (n, 1) 0/1 mask of active nodes, column layout
    m_row = mrow_carry[cur]                       # (1, n) same mask, row layout

    # ---- assemble the conv input.
    #   encoder / deepest : xin = m_cur ⊙ x_carry                      (x_carry already pooled)
    #   decoder           : xin = m_cur ⊙ (res[cur] + m_{cur+1} ⊙ x_carry)   (unpool == masking)
    res_idx = jnp.where(is_dec, cur, 0)           # clamped so loads are always in-bounds
    up_idx = jnp.where(is_dec, cur + 1, cur)
    skip = jnp.where(is_dec, res_carry[res_idx], 0.0)
    up_m = jnp.where(is_dec, mcol_carry[up_idx], 1.0)
    xin = m_col * (skip + up_m * x_carry[...])

    pre = _gcn_norm_conv(adj_ref[...], xin, w_ref[0], b_ref[0], m_col, m_row)
    x_act = jnp.maximum(pre, 0.0)                 # ReLU (final step uses `pre` + log_softmax below)

    # ---- encoder levels: store skip, TopK-pool in-kernel, build next-level masks.
    #      Statically unrolled over the (tiny) depth so k and all scratch indices are static.
    for lvl in range(depth):
        @pl.when(i == lvl)
        def _(lvl=lvl):
            res_carry[lvl] = x_act                # skip connection (rows outside m_lvl are re-masked later)
            k = float(ks[lvl])                    # ceil(ratio * n_active), compile-time constant
            # TopKPooling score tanh(x · p̂) as a VPU lane reduction (p̂ pre-normalized, zero-padded).
            s_col = jnp.tanh(jnp.sum(x_act * p_ref[0], axis=1, keepdims=True))       # (n, 1)
            row_id = jax.lax.broadcasted_iota(jnp.int32, (n, n), 0)
            col_id = jax.lax.broadcasted_iota(jnp.int32, (n, n), 1)
            s_i = jnp.broadcast_to(s_col, (n, n))                                     # score of row node
            # score in row layout via diagonal + sublane reduction (no vector transpose needed)
            s_row = jnp.sum(jnp.where(row_id == col_id, s_i, 0.0), axis=0, keepdims=True)  # (1, n)
            s_j = jnp.broadcast_to(s_row, (n, n))                                     # score of col node
            # node b "beats" node a iff s_b > s_a, ties broken toward the lower index
            # (same selection set as jax.lax.top_k on the masked scores).
            beats_col = (s_j > s_i) | ((s_j == s_i) & (col_id < row_id))   # [a, b]: b beats a
            rank_col = jnp.sum(jnp.where(beats_col, 1.0, 0.0) * m_row, axis=1, keepdims=True)  # (n, 1)
            beats_row = (s_i > s_j) | ((s_i == s_j) & (row_id < col_id))   # [a, b]: a beats b
            rank_row = jnp.sum(jnp.where(beats_row, 1.0, 0.0) * m_col, axis=0, keepdims=True)  # (1, n)
            new_mcol = m_col * jnp.where(rank_col < k, 1.0, 0.0)
            new_mrow = m_row * jnp.where(rank_row < k, 1.0, 0.0)
            mcol_carry[lvl + 1] = new_mcol
            mrow_carry[lvl + 1] = new_mrow
            x_carry[...] = new_mcol * (x_act * s_col)       # pooled features for the next level
            # TODO(synk): training-mode dropout not reproduced (eval-mode identity).

    # ---- deepest conv and non-final decoder levels: carry the ReLU output forward.
    @pl.when(i >= depth)
    def _():
        x_carry[...] = x_act

    # ---- final step: masked log_softmax over the real class lanes; single output store.
    @pl.when(i == 2 * depth)
    def _():
        lane = jax.lax.broadcasted_iota(jnp.int32, pre.shape, 1)
        valid = lane < num_classes
        logits = jnp.where(valid, pre, -1e30)
        mx = jnp.max(logits, axis=1, keepdims=True)
        lse = mx + jnp.log(jnp.sum(jnp.exp(logits - mx), axis=1, keepdims=True))
        out_ref[...] = jnp.where(valid, logits - lse, 0.0)


# ---------------------------------------------------------------------------
# Parameters
# ---------------------------------------------------------------------------
def _glorot(key, shape):
    fan_in, fan_out = shape
    lim = math.sqrt(6.0 / (fan_in + fan_out))
    return jax.random.uniform(key, shape, jnp.float32, -lim, lim)


def init_params(key):
    params = {"enc_w": [], "enc_b": [], "dec_w": [], "dec_b": [], "pool_p": []}

    def nxt():
        nonlocal key
        key, sub = jax.random.split(key)
        return sub

    params["enc_w"].append(_glorot(nxt(), (NUM_NODE_FEATURES, NUM_CHANNELS)))
    params["enc_b"].append(jnp.zeros((NUM_CHANNELS,), jnp.float32))
    for _ in range(DEPTH):
        params["pool_p"].append(_glorot(nxt(), (NUM_CHANNELS, 1))[:, 0])
        params["enc_w"].append(_glorot(nxt(), (NUM_CHANNELS, NUM_CHANNELS)))
        params["enc_b"].append(jnp.zeros((NUM_CHANNELS,), jnp.float32))
    for i in range(DEPTH):
        cout = NUM_CHANNELS if i < DEPTH - 1 else NUM_CLASSES
        params["dec_w"].append(_glorot(nxt(), (NUM_CHANNELS, cout)))
        params["dec_b"].append(jnp.zeros((cout,), jnp.float32))
    return params


def prepare_params(params):
    """Zero-pad channel dims to 128 lanes, pre-cast MXU operands, stack per-step tensors.

    Step order: enc_w[0..DEPTH] (DEPTH+1 convs), then dec_w[0..DEPTH-1] (DEPTH convs).
    """
    def pad_w(w):
        return (jnp.zeros((LANE, LANE), jnp.float32)
                .at[:w.shape[0], :w.shape[1]].set(w).astype(MXU_DTYPE))

    def pad_b(b):
        return jnp.zeros((1, LANE), jnp.float32).at[0, :b.shape[0]].set(b)

    def pad_p(p):
        p_hat = p / jnp.sqrt(jnp.sum(p * p))
        return jnp.zeros((1, LANE), jnp.float32).at[0, :p.shape[0]].set(p_hat)

    w_list = [pad_w(w) for w in params["enc_w"]] + [pad_w(w) for w in params["dec_w"]]
    b_list = [pad_b(b) for b in params["enc_b"]] + [pad_b(b) for b in params["dec_b"]]
    p_list = [pad_p(p) for p in params["pool_p"]] + \
             [jnp.zeros((1, LANE), jnp.float32)] * (DEPTH + 1)      # unused on non-encoder steps
    return {
        "w_stack": jnp.stack(w_list),        # (2*DEPTH+1, LANE, LANE), MXU dtype
        "b_stack": jnp.stack(b_list),        # (2*DEPTH+1, 1, LANE),    f32
        "p_stack": jnp.stack(p_list),        # (2*DEPTH+1, 1, LANE),    f32
    }


# ---------------------------------------------------------------------------
# Forward pass (mirrors GraphUNet.forward, eval mode) — ONE pallas_call.
# ---------------------------------------------------------------------------
def graph_unet_forward(x, adj, prep):
    n = x.shape[0]
    x_pad = jnp.zeros((n, LANE), jnp.float32).at[:, : x.shape[1]].set(x)

    # Per-level top-k counts (static: ceil(ratio * n_active)).
    ks, na = [], n
    for _ in range(DEPTH):
        na = int(math.ceil(TOP_K_POOLING * na))
        ks.append(na)

    nsteps = 2 * DEPTH + 1
    kernel = functools.partial(_graph_unet_kernel, depth=DEPTH,
                               num_classes=NUM_CLASSES, ks=tuple(ks))
    out = pl.pallas_call(
        kernel,
        out_shape=jax.ShapeDtypeStruct((n, LANE), jnp.float32),
        grid=(nsteps,),
        in_specs=[
            pl.BlockSpec((n, n), lambda i: (0, 0)),              # adjacency (resident)
            pl.BlockSpec((n, LANE), lambda i: (0, 0)),           # padded input features (resident)
            pl.BlockSpec((1, LANE, LANE), lambda i: (i, 0, 0)),  # per-step weight
            pl.BlockSpec((1, 1, LANE), lambda i: (i, 0, 0)),     # per-step bias
            pl.BlockSpec((1, 1, LANE), lambda i: (i, 0, 0)),     # per-level pool vector (zeros if unused)
        ],
        out_specs=pl.BlockSpec((n, LANE), lambda i: (0, 0)),
        scratch_shapes=[
            pltpu.VMEM((n, LANE), jnp.float32),                  # x carried between levels
            pltpu.VMEM((DEPTH, n, LANE), jnp.float32),           # skip connections (res)
            pltpu.VMEM((DEPTH + 1, n, 1), jnp.float32),          # node masks, column layout
            pltpu.VMEM((DEPTH + 1, 1, n), jnp.float32),          # node masks, row layout
        ],
        compiler_params=pltpu.CompilerParams(dimension_semantics=("arbitrary",)),
    )(adj.astype(MXU_DTYPE), x_pad, prep["w_stack"], prep["b_stack"], prep["p_stack"])
    return out[:, :NUM_CLASSES]


# ---------------------------------------------------------------------------
# Pure-JAX permutation-based reference (mirrors the PyTorch module) for verification
# ---------------------------------------------------------------------------
def _reference_forward(x, adj, params):
    def gcn(adj_l, x_l, w, b, act):
        m = adj_l.shape[0]
        a = adj_l + 2.0 * jnp.eye(m, dtype=jnp.float32)
        d = jax.lax.rsqrt(jnp.sum(a, axis=1))
        out = (a * d[:, None] * d[None, :]) @ (x_l @ w) + b
        if act == "relu":
            return jnp.maximum(out, 0.0)
        if act == "log_softmax":
            return jax.nn.log_softmax(out, axis=1)
        return out

    xc = gcn(adj, x, params["enc_w"][0], params["enc_b"][0], "relu")
    xs, adjs, perms = [xc], [adj], []
    adjc = adj
    for i in range(1, DEPTH + 1):
        p = params["pool_p"][i - 1]
        s = jnp.tanh(xc @ (p / jnp.sqrt(jnp.sum(p * p))))
        k = int(math.ceil(TOP_K_POOLING * xc.shape[0]))
        _, perm = jax.lax.top_k(s, k)
        xc = xc[perm] * s[perm][:, None]
        adjc = adjc[perm][:, perm]
        xc = gcn(adjc, xc, params["enc_w"][i], params["enc_b"][i], "relu")
        perms.append(perm)
        if i < DEPTH:
            xs.append(xc)
            adjs.append(adjc)
    for i in range(DEPTH):
        j = DEPTH - i - 1
        res, adj_l, perm = xs[j], adjs[j], perms[j]
        up = jnp.zeros_like(res).at[perm].set(xc)
        act = "relu" if i < DEPTH - 1 else "log_softmax"
        xc = gcn(adj_l, res + up, params["dec_w"][i], params["dec_b"][i], act)
    return xc


# ---------------------------------------------------------------------------
if __name__ == "__main__":
    key = jax.random.PRNGKey(0)
    k_x, k_a, k_p = jax.random.split(key, 3)

    x = jax.random.normal(k_x, (NUM_NODES, NUM_NODE_FEATURES), dtype=jnp.float32)
    u = jax.random.uniform(k_a, (NUM_NODES, NUM_NODES))
    upper = jnp.triu((u < 0.15).astype(jnp.float32), k=1)
    adj = upper + upper.T                                  # symmetric, no self-loops

    params = init_params(k_p)
    prep = prepare_params(params)

    fwd = jax.jit(graph_unet_forward)
    out = jax.block_until_ready(fwd(x, adj, prep))

    assert out.shape == (NUM_NODES, NUM_CLASSES)
    assert bool(jnp.all(jnp.isfinite(out)))

    ref = _reference_forward(x, adj, params)
    assert bool(jnp.allclose(out, ref, atol=1e-3, rtol=1e-3)), \
        float(jnp.max(jnp.abs(out - ref)))

    print("KERNEL_OK")
</pallas_src>

<mosaic_0001>
module attributes {stable_mosaic.version = 11 : i64} {
  func.func @_graph_unet_kernel(%arg0: i32, %arg1: memref<64x64xf32, #tpu.memory_space<vmem>>, %arg2: memref<64x128xf32, #tpu.memory_space<vmem>>, %arg3: memref<1x128x128xf32, #tpu.memory_space<vmem>>, %arg4: memref<1x1x128xf32, #tpu.memory_space<vmem>>, %arg5: memref<1x1x128xf32, #tpu.memory_space<vmem>>, %arg6: memref<64x128xf32, #tpu.memory_space<vmem>>, %arg7: memref<64x128xf32, #tpu.memory_space<vmem>>, %arg8: memref<3x64x128xf32, #tpu.memory_space<vmem>>, %arg9: memref<4x64x1xf32, #tpu.memory_space<vmem>>, %arg10: memref<4x1x64xf32, #tpu.memory_space<vmem>>) attributes {dimension_semantics = [#tpu.dimension_semantics<arbitrary>], iteration_bounds = array<i64: 7>, scalar_prefetch = 0 : i64, scratch_operands = 4 : i64, tpu.core_type = #tpu.core_type<tc>, window_params = [{pipeline_mode = #tpu.pipeline_mode<synchronous>, transform_indices = @transform_0, window_bounds = array<i64: 64, 64>}, {pipeline_mode = #tpu.pipeline_mode<synchronous>, transform_indices = @transform_1, window_bounds = array<i64: 64, 128>}, {transform_indices = @transform_2, window_bounds = array<i64: 1, 128, 128>}, {transform_indices = @transform_3, window_bounds = array<i64: 1, 1, 128>}, {transform_indices = @transform_4, window_bounds = array<i64: 1, 1, 128>}, {pipeline_mode = #tpu.pipeline_mode<synchronous>, transform_indices = @transform_5, window_bounds = array<i64: 64, 128>}]} {
    %c0_i32 = arith.constant 0 : i32
    %0 = arith.cmpi eq, %arg0, %c0_i32 : i32
    %1 = arith.extui %0 : i1 to i32
    %c0_i32_0 = arith.constant 0 : i32
    %2 = arith.cmpi ne, %1, %c0_i32_0 : i32
    scf.if %2 {
      %c0_35 = arith.constant 0 : index
      %c0_36 = arith.constant 0 : index
      %77 = vector.load %arg2[%c0_35, %c0_36] : memref<64x128xf32, #tpu.memory_space<vmem>>, vector<64x128xf32>
      %c0_37 = arith.constant 0 : index
      %c0_38 = arith.constant 0 : index
      %78 = vector.load %arg7[%c0_37, %c0_38] : memref<64x128xf32, #tpu.memory_space<vmem>>, vector<64x128xf32>
      tpu.vector_store %arg7[%c0_37, %c0_38], %77 {strides = array<i32>} : memref<64x128xf32, #tpu.memory_space<vmem>>, vector<64x128xf32>,
      %cst_39 = arith.constant 0.000000e+00 : f32
      %79 = vector.broadcast %cst_39 : f32 to vector<3x64x128xf32>
      %c0_40 = arith.constant 0 : index
      %c0_41 = arith.constant 0 : index
      %c0_42 = arith.constant 0 : index
      %80 = vector.load %arg8[%c0_40, %c0_41, %c0_42] : memref<3x64x128xf32, #tpu.memory_space<vmem>>, vector<3x64x128xf32>
      tpu.vector_store %arg8[%c0_40, %c0_41, %c0_42], %79 {strides = array<i32>} : memref<3x64x128xf32, #tpu.memory_space<vmem>>, vector<3x64x128xf32>,
      %cst_43 = arith.constant 0.000000e+00 : f32
      %81 = vector.broadcast %cst_43 : f32 to vector<4x64x1xf32>
      %c0_44 = arith.constant 0 : index
      %c0_45 = arith.constant 0 : index
      %c0_46 = arith.constant 0 : index
      %82 = vector.load %arg9[%c0_44, %c0_45, %c0_46] : memref<4x64x1xf32, #tpu.memory_space<vmem>>, vector<4x64x1xf32>
      tpu.vector_store %arg9[%c0_44, %c0_45, %c0_46], %81 {strides = array<i32>} : memref<4x64x1xf32, #tpu.memory_space<vmem>>, vector<4x64x1xf32>,
      %cst_47 = arith.constant 0.000000e+00 : f32
      %83 = vector.broadcast %cst_47 : f32 to vector<4x1x64xf32>
      %c0_48 = arith.constant 0 : index
      %c0_49 = arith.constant 0 : index
      %c0_50 = arith.constant 0 : index
      %84 = vector.load %arg10[%c0_48, %c0_49, %c0_50] : memref<4x1x64xf32, #tpu.memory_space<vmem>>, vector<4x1x64xf32>
      tpu.vector_store %arg10[%c0_48, %c0_49, %c0_50], %83 {strides = array<i32>} : memref<4x1x64xf32, #tpu.memory_space<vmem>>, vector<4x1x64xf32>,
      %cst_51 = arith.constant 1.000000e+00 : f32
      %85 = vector.broadcast %cst_51 : f32 to vector<64x1xf32>
      %c0_52 = arith.constant 0 : index
      %c0_53 = arith.constant 0 : index
      %c0_54 = arith.constant 0 : index
      %86 = vector.load %arg9[%c0_52, %c0_53, %c0_54] : memref<4x64x1xf32, #tpu.memory_space<vmem>>, vector<1x64x1xf32>
      %87 = vector.shape_cast %86 : vector<1x64x1xf32> to vector<64x1xf32>
      %88 = vector.shape_cast %85 : vector<64x1xf32> to vector<1x64x1xf32>
      tpu.vector_store %arg9[%c0_52, %c0_53, %c0_54], %88 {strides = array<i32>} : memref<4x64x1xf32, #tpu.memory_space<vmem>>, vector<1x64x1xf32>,
      %cst_55 = arith.constant 1.000000e+00 : f32
      %89 = vector.broadcast %cst_55 : f32 to vector<1x64xf32>
      %c0_56 = arith.constant 0 : index
      %c0_57 = arith.constant 0 : index
      %c0_58 = arith.constant 0 : index
      %90 = vector.load %arg10[%c0_56, %c0_57, %c0_58] : memref<4x1x64xf32, #tpu.memory_space<vmem>>, vector<1x1x64xf32>
      %91 = vector.shape_cast %90 : vector<1x1x64xf32> to vector<1x64xf32>
      %92 = vector.shape_cast %89 : vector<1x64xf32> to vector<1x1x64xf32>
      tpu.vector_store %arg10[%c0_56, %c0_57, %c0_58], %92 {strides = array<i32>} : memref<4x1x64xf32, #tpu.memory_space<vmem>>, vector<1x1x64xf32>,
    } else {
    }
    %c3_i32 = arith.constant 3 : i32
    %3 = arith.cmpi sgt, %arg0, %c3_i32 : i32
    %c6_i32 = arith.constant 6 : i32
    %4 = arith.subi %c6_i32, %arg0 : i32
    %5 = arith.select %3, %4, %arg0 : i32
    %6 = arith.index_cast %5 : i32 to index
    %c0 = arith.constant 0 : index
    %c0_1 = arith.constant 0 : index
    %7 = vector.load %arg9[%6, %c0, %c0_1] : memref<4x64x1xf32, #tpu.memory_space<vmem>>, vector<1x64x1xf32>
    %8 = vector.shape_cast %7 : vector<1x64x1xf32> to vector<64x1xf32>
    %9 = arith.index_cast %5 : i32 to index
    %c0_2 = arith.constant 0 : index
    %c0_3 = arith.constant 0 : index
    %10 = vector.load %arg10[%9, %c0_2, %c0_3] : memref<4x1x64xf32, #tpu.memory_space<vmem>>, vector<1x1x64xf32>
    %11 = vector.shape_cast %10 : vector<1x1x64xf32> to vector<1x64xf32>
    %c0_i32_4 = arith.constant 0 : i32
    %12 = arith.select %3, %5, %c0_i32_4 : i32
    %c1_i32 = arith.constant 1 : i32
    %13 = arith.addi %5, %c1_i32 : i32
    %14 = arith.select %3, %13, %5 : i32
    %15 = arith.index_cast %12 : i32 to index
    %c0_5 = arith.constant 0 : index
    %c0_6 = arith.constant 0 : index
    %16 = vector.load %arg8[%15, %c0_5, %c0_6] : memref<3x64x128xf32, #tpu.memory_space<vmem>>, vector<1x64x128xf32>
    %17 = vector.shape_cast %16 : vector<1x64x128xf32> to vector<64x128xf32>
    %cst = arith.constant 0.000000e+00 : f32
    %18 = vector.broadcast %cst : f32 to vector<64x128xf32>
    %19 = arith.select %3, %17, %18 : vector<64x128xf32>
    %20 = arith.index_cast %14 : i32 to index
    %c0_7 = arith.constant 0 : index
    %c0_8 = arith.constant 0 : index
    %21 = vector.load %arg9[%20, %c0_7, %c0_8] : memref<4x64x1xf32, #tpu.memory_space<vmem>>, vector<1x64x1xf32>
    %22 = vector.shape_cast %21 : vector<1x64x1xf32> to vector<64x1xf32>
    %cst_9 = arith.constant 1.000000e+00 : f32
    %23 = vector.broadcast %cst_9 : f32 to vector<64x1xf32>
    %24 = arith.select %3, %22, %23 : vector<64x1xf32>
    %c0_10 = arith.constant 0 : index
    %c0_11 = arith.constant 0 : index
    %25 = vector.load %arg7[%c0_10, %c0_11] : memref<64x128xf32, #tpu.memory_space<vmem>>, vector<64x128xf32>
    %26 = vector.broadcast %24 : vector<64x1xf32> to vector<64x128xf32>
    %27 = arith.mulf %26, %25 : vector<64x128xf32>
    %28 = arith.addf %19, %27 : vector<64x128xf32>
    %29 = vector.broadcast %8 : vector<64x1xf32> to vector<64x128xf32>
    %30 = arith.mulf %29, %28 : vector<64x128xf32>
    %c0_12 = arith.constant 0 : index
    %c0_13 = arith.constant 0 : index
    %31 = vector.load %arg1[%c0_12, %c0_13] : memref<64x64xf32, #tpu.memory_space<vmem>>, vector<64x64xf32>
    %c0_14 = arith.constant 0 : index
    %c0_15 = arith.constant 0 : index
    %c0_16 = arith.constant 0 : index
    %32 = vector.load %arg3[%c0_14, %c0_15, %c0_16] : memref<1x128x128xf32, #tpu.memory_space<vmem>>, vector<1x128x128xf32>
    %33 = vector.shape_cast %32 : vector<1x128x128xf32> to vector<128x128xf32>
    %c0_17 = arith.constant 0 : index
    %c0_18 = arith.constant 0 : index
    %c0_19 = arith.constant 0 : index
    %34 = vector.load %arg4[%c0_17, %c0_18, %c0_19] : memref<1x1x128xf32, #tpu.memory_space<vmem>>, vector<1x1x128xf32>
    %35 = vector.shape_cast %34 : vector<1x1x128xf32> to vector<1x128xf32>
    %36 = vector.broadcast %11 : vector<1x64xf32> to vector<64x64xf32>
    %37 = arith.mulf %31, %36 : vector<64x64xf32>
    %cst_20 = arith.constant dense<0.000000e+00> : vector<64xf32>
    %38 = vector.multi_reduction <add>, %37, %cst_20 [1] : vector<64x64xf32> to vector<64xf32>
    %39 = vector.shape_cast %38 : vector<64xf32> to vector<64x1xf32>
    %40 = arith.mulf %8, %39 : vector<64x1xf32>
    %cst_21 = arith.constant 2.000000e+00 : f32
    %41 = vector.broadcast %cst_21 : f32 to vector<64x1xf32>
    %42 = arith.addf %40, %41 : vector<64x1xf32>
    %43 = math.rsqrt %42 : vector<64x1xf32>
    %cst_22 = arith.constant dense<0.000000e+00> : vector<64x128xf32>
    %44 = tpu.matmul %30, %33, %cst_22 {dimension_numbers = #tpu.dot_dimension_numbers<[1], [0], [0], [1], [0, 0, 1, 1], [], []>} : vector<64x128xf32>, vector<128x128xf32>, vector<64x128xf32> -> vector<64x128xf32>
    %45 = arith.mulf %8, %43 : vector<64x1xf32>
    %46 = vector.broadcast %45 : vector<64x1xf32> to vector<64x128xf32>
    %47 = arith.mulf %46, %44 : vector<64x128xf32>
    %cst_23 = arith.constant dense<0.000000e+00> : vector<64x128xf32>
    %48 = tpu.matmul %31, %47, %cst_23 {dimension_numbers = #tpu.dot_dimension_numbers<[1], [0], [0], [1], [0, 0, 1, 1], [], []>} : vector<64x64xf32>, vector<64x128xf32>, vector<64x128xf32> -> vector<64x128xf32>
    %49 = arith.mulf %8, %43 : vector<64x1xf32>
    %50 = vector.broadcast %49 : vector<64x1xf32> to vector<64x128xf32>
    %51 = arith.mulf %50, %48 : vector<64x128xf32>
    %cst_24 = arith.constant 2.000000e+00 : f32
    %52 = vector.broadcast %cst_24 : f32 to vector<64x1xf32>
    %53 = arith.mulf %52, %43 : vector<64x1xf32>
    %54 = arith.mulf %53, %43 : vector<64x1xf32>
    %55 = vector.broadcast %54 : vector<64x1xf32> to vector<64x128xf32>
    %56 = arith.mulf %55, %44 : vector<64x128xf32>
    %57 = arith.addf %51, %56 : vector<64x128xf32>
    %58 = vector.broadcast %35 : vector<1x128xf32> to vector<64x128xf32>
    %59 = arith.addf %57, %58 : vector<64x128xf32>
    %cst_25 = arith.constant 0.000000e+00 : f32
    %60 = vector.broadcast %cst_25 : f32 to vector<64x128xf32>
    %61 = arith.maximumf %59, %60 : vector<64x128xf32>
    %c0_i32_26 = arith.constant 0 : i32
    %62 = arith.cmpi eq, %arg0, %c0_i32_26 : i32
    %63 = arith.extui %62 : i1 to i32
    %c0_i32_27 = arith.constant 0 : i32
    %64 = arith.cmpi ne, %63, %c0_i32_27 : i32
    scf.if %64 {
      %c0_35 = arith.constant 0 : index
      %c0_36 = arith.constant 0 : index
      %c0_37 = arith.constant 0 : index
      %77 = vector.load %arg8[%c0_35, %c0_36, %c0_37] : memref<3x64x128xf32, #tpu.memory_space<vmem>>, vector<1x64x128xf32>
      %78 = vector.shape_cast %77 : vector<1x64x128xf32> to vector<64x128xf32>
      %79 = vector.shape_cast %61 : vector<64x128xf32> to vector<1x64x128xf32>
      tpu.vector_store %arg8[%c0_35, %c0_36, %c0_37], %79 {strides = array<i32>} : memref<3x64x128xf32, #tpu.memory_space<vmem>>, vector<1x64x128xf32>,
      %c0_38 = arith.constant 0 : index
      %c0_39 = arith.constant 0 : index
      %c0_40 = arith.constant 0 : index
      %80 = vector.load %arg5[%c0_38, %c0_39, %c0_40] : memref<1x1x128xf32, #tpu.memory_space<vmem>>, vector<1x1x128xf32>
      %81 = vector.shape_cast %80 : vector<1x1x128xf32> to vector<1x128xf32>
      %82 = vector.broadcast %81 : vector<1x128xf32> to vector<64x128xf32>
      %83 = arith.mulf %61, %82 : vector<64x128xf32>
      %cst_41 = arith.constant dense<0.000000e+00> : vector<64xf32>
      %84 = vector.multi_reduction <add>, %83, %cst_41 [1] : vector<64x128xf32> to vector<64xf32>
      %85 = vector.shape_cast %84 : vector<64xf32> to vector<64x1xf32>
      %86 = math.tanh %85 : vector<64x1xf32>
      %87 = tpu.iota {dimensions = array<i32: 0>} : vector<64x64xi32>
      %88 = tpu.iota {dimensions = array<i32: 1>} : vector<64x64xi32>
      %89 = vector.shape_cast %86 : vector<64x1xf32> to vector<64x1xf32>
      %90 = vector.broadcast %89 : vector<64x1xf32> to vector<64x64xf32>
      %91 = arith.cmpi eq, %87, %88 : vector<64x64xi32>
      %cst_42 = arith.constant 0.000000e+00 : f32
      %92 = vector.broadcast %cst_42 : f32 to vector<64x64xf32>
      %93 = arith.select %91, %90, %92 : vector<64x64xi1>, vector<64x64xf32>
      %cst_43 = arith.constant dense<0.000000e+00> : vector<64xf32>
      %94 = vector.multi_reduction <add>, %93, %cst_43 [0] : vector<64x64xf32> to vector<64xf32>
      %95 = vector.shape_cast %94 : vector<64xf32> to vector<1x64xf32>
      %96 = vector.shape_cast %95 : vector<1x64xf32> to vector<1x64xf32>
      %97 = vector.broadcast %96 : vector<1x64xf32> to vector<64x64xf32>
      %98 = arith.cmpf ogt, %97, %90 : vector<64x64xf32>
      %99 = arith.cmpf oeq, %97, %90 : vector<64x64xf32>
      %100 = arith.cmpi slt, %88, %87 : vector<64x64xi32>
      %101 = arith.andi %99, %100 : vector<64x64xi1>
      %102 = arith.ori %98, %101 : vector<64x64xi1>
      %cst_44 = arith.constant 1.000000e+00 : f32
      %cst_45 = arith.constant 0.000000e+00 : f32
      %103 = vector.broadcast %cst_44 : f32 to vector<64x64xf32>
      %104 = vector.broadcast %cst_45 : f32 to vector<64x64xf32>
      %105 = arith.select %102, %103, %104 : vector<64x64xi1>, vector<64x64xf32>
      %106 = vector.broadcast %11 : vector<1x64xf32> to vector<64x64xf32>
      %107 = arith.mulf %105, %106 : vector<64x64xf32>
      %cst_46 = arith.constant dense<0.000000e+00> : vector<64xf32>
      %108 = vector.multi_reduction <add>, %107, %cst_46 [1] : vector<64x64xf32> to vector<64xf32>
      %109 = vector.shape_cast %108 : vector<64xf32> to vector<64x1xf32>
      %110 = arith.cmpf ogt, %90, %97 : vector<64x64xf32>
      %111 = arith.cmpf oeq, %90, %97 : vector<64x64xf32>
      %112 = arith.cmpi slt, %87, %88 : vector<64x64xi32>
      %113 = arith.andi %111, %112 : vector<64x64xi1>
      %114 = arith.ori %110, %113 : vector<64x64xi1>
      %cst_47 = arith.constant 1.000000e+00 : f32
      %cst_48 = arith.constant 0.000000e+00 : f32
      %115 = vector.broadcast %cst_47 : f32 to vector<64x64xf32>
      %116 = vector.broadcast %cst_48 : f32 to vector<64x64xf32>
      %117 = arith.select %114, %115, %116 : vector<64x64xi1>, vector<64x64xf32>
      %118 = vector.broadcast %8 : vector<64x1xf32> to vector<64x64xf32>
      %119 = arith.mulf %117, %118 : vector<64x64xf32>
      %cst_49 = arith.constant dense<0.000000e+00> : vector<64xf32>
      %120 = vector.multi_reduction <add>, %119, %cst_49 [0] : vector<64x64xf32> to vector<64xf32>
      %121 = vector.shape_cast %120 : vector<64xf32> to vector<1x64xf32>
      %cst_50 = arith.constant 3.200000e+01 : f32
      %122 = vector.broadcast %cst_50 : f32 to vector<64x1xf32>
      %123 = arith.cmpf olt, %109, %122 : vector<64x1xf32>
      %cst_51 = arith.constant 1.000000e+00 : f32
      %cst_52 = arith.constant 0.000000e+00 : f32
      %124 = vector.broadcast %cst_51 : f32 to vector<64x1xf32>
      %125 = vector.broadcast %cst_52 : f32 to vector<64x1xf32>
      %126 = arith.select %123, %124, %125 : vector<64x1xi1>, vector<64x1xf32>
      %127 = arith.mulf %8, %126 : vector<64x1xf32>
      %cst_53 = arith.constant 3.200000e+01 : f32
      %128 = vector.broadcast %cst_53 : f32 to vector<1x64xf32>
      %129 = arith.cmpf olt, %121, %128 : vector<1x64xf32>
      %cst_54 = arith.constant 1.000000e+00 : f32
      %cst_55 = arith.constant 0.000000e+00 : f32
      %130 = vector.broadcast %cst_54 : f32 to vector<1x64xf32>
      %131 = vector.broadcast %cst_55 : f32 to vector<1x64xf32>
      %132 = arith.select %129, %130, %131 : vector<1x64xi1>, vector<1x64xf32>
      %133 = arith.mulf %11, %132 : vector<1x64xf32>
      %c1 = arith.constant 1 : index
      %c0_56 = arith.constant 0 : index
      %c0_57 = arith.constant 0 : index
      %134 = vector.load %arg9[%c1, %c0_56, %c0_57] : memref<4x64x1xf32, #tpu.memory_space<vmem>>, vector<1x64x1xf32>
      %135 = vector.shape_cast %134 : vector<1x64x1xf32> to vector<64x1xf32>
      %136 = vector.shape_cast %127 : vector<64x1xf32> to vector<1x64x1xf32>
      tpu.vector_store %arg9[%c1, %c0_56, %c0_57], %136 {strides = array<i32>} : memref<4x64x1xf32, #tpu.memory_space<vmem>>, vector<1x64x1xf32>,
      %c1_58 = arith.constant 1 : index
      %c0_59 = arith.constant 0 : index
      %c0_60 = arith.constant 0 : index
      %137 = vector.load %arg10[%c1_58, %c0_59, %c0_60] : memref<4x1x64xf32, #tpu.memory_space<vmem>>, vector<1x1x64xf32>
      %138 = vector.shape_cast %137 : vector<1x1x64xf32> to vector<1x64xf32>
      %139 = vector.shape_cast %133 : vector<1x64xf32> to vector<1x1x64xf32>
      tpu.vector_store %arg10[%c1_58, %c0_59, %c0_60], %139 {strides = array<i32>} : memref<4x1x64xf32, #tpu.memory_space<vmem>>, vector<1x1x64xf32>,
      %140 = vector.broadcast %86 : vector<64x1xf32> to vector<64x128xf32>
      %141 = arith.mulf %61, %140 : vector<64x128xf32>
      %142 = vector.broadcast %127 : vector<64x1xf32> to vector<64x128xf32>
      %143 = arith.mulf %142, %141 : vector<64x128xf32>
      %c0_61 = arith.constant 0 : index
      %c0_62 = arith.constant 0 : index
      %144 = vector.load %arg7[%c0_61, %c0_62] : memref<64x128xf32, #tpu.memory_space<vmem>>, vector<64x128xf32>
      tpu.vector_store %arg7[%c0_61, %c0_62], %143 {strides = array<i32>} : memref<64x128xf32, #tpu.memory_space<vmem>>, vector<64x128xf32>,
    } else {
    }
    %c1_i32_28 = arith.constant 1 : i32
    %65 = arith.cmpi eq, %arg0, %c1_i32_28 : i32
    %66 = arith.extui %65 : i1 to i32
    %c0_i32_29 = arith.constant 0 : i32
    %67 = arith.cmpi ne, %66, %c0_i32_29 : i32
    scf.if %67 {
      %c1 = arith.constant 1 : index
      %c0_35 = arith.constant 0 : index
      %c0_36 = arith.constant 0 : index
      %77 = vector.load %arg8[%c1, %c0_35, %c0_36] : memref<3x64x128xf32, #tpu.memory_space<vmem>>, vector<1x64x128xf32>
      %78 = vector.shape_cast %77 : vector<1x64x128xf32> to vector<64x128xf32>
      %79 = vector.shape_cast %61 : vector<64x128xf32> to vector<1x64x128xf32>
      tpu.vector_store %arg8[%c1, %c0_35, %c0_36], %79 {strides = array<i32>} : memref<3x64x128xf32, #tpu.memory_space<vmem>>, vector<1x64x128xf32>,
      %c0_37 = arith.constant 0 : index
      %c0_38 = arith.constant 0 : index
      %c0_39 = arith.constant 0 : index
      %80 = vector.load %arg5[%c0_37, %c0_38, %c0_39] : memref<1x1x128xf32, #tpu.memory_space<vmem>>, vector<1x1x128xf32>
      %81 = vector.shape_cast %80 : vector<1x1x128xf32> to vector<1x128xf32>
      %82 = vector.broadcast %81 : vector<1x128xf32> to vector<64x128xf32>
      %83 = arith.mulf %61, %82 : vector<64x128xf32>
      %cst_40 = arith.constant dense<0.000000e+00> : vector<64xf32>
      %84 = vector.multi_reduction <add>, %83, %cst_40 [1] : vector<64x128xf32> to vector<64xf32>
      %85 = vector.shape_cast %84 : vector<64xf32> to vector<64x1xf32>
      %86 = math.tanh %85 : vector<64x1xf32>
      %87 = tpu.iota {dimensions = array<i32: 0>} : vector<64x64xi32>
      %88 = tpu.iota {dimensions = array<i32: 1>} : vector<64x64xi32>
      %89 = vector.shape_cast %86 : vector<64x1xf32> to vector<64x1xf32>
      %90 = vector.broadcast %89 : vector<64x1xf32> to vector<64x64xf32>
      %91 = arith.cmpi eq, %87, %88 : vector<64x64xi32>
      %cst_41 = arith.constant 0.000000e+00 : f32
      %92 = vector.broadcast %cst_41 : f32 to vector<64x64xf32>
      %93 = arith.select %91, %90, %92 : vector<64x64xi1>, vector<64x64xf32>
      %cst_42 = arith.constant dense<0.000000e+00> : vector<64xf32>
      %94 = vector.multi_reduction <add>, %93, %cst_42 [0] : vector<64x64xf32> to vector<64xf32>
      %95 = vector.shape_cast %94 : vector<64xf32> to vector<1x64xf32>
      %96 = vector.shape_cast %95 : vector<1x64xf32> to vector<1x64xf32>
      %97 = vector.broadcast %96 : vector<1x64xf32> to vector<64x64xf32>
      %98 = arith.cmpf ogt, %97, %90 : vector<64x64xf32>
      %99 = arith.cmpf oeq, %97, %90 : vector<64x64xf32>
      %100 = arith.cmpi slt, %88, %87 : vector<64x64xi32>
      %101 = arith.andi %99, %100 : vector<64x64xi1>
      %102 = arith.ori %98, %101 : vector<64x64xi1>
      %cst_43 = arith.constant 1.000000e+00 : f32
      %cst_44 = arith.constant 0.000000e+00 : f32
      %103 = vector.broadcast %cst_43 : f32 to vector<64x64xf32>
      %104 = vector.broadcast %cst_44 : f32 to vector<64x64xf32>
      %105 = arith.select %102, %103, %104 : vector<64x64xi1>, vector<64x64xf32>
      %106 = vector.broadcast %11 : vector<1x64xf32> to vector<64x64xf32>
      %107 = arith.mulf %105, %106 : vector<64x64xf32>
      %cst_45 = arith.constant dense<0.000000e+00> : vector<64xf32>
      %108 = vector.multi_reduction <add>, %107, %cst_45 [1] : vector<64x64xf32> to vector<64xf32>
      %109 = vector.shape_cast %108 : vector<64xf32> to vector<64x1xf32>
      %110 = arith.cmpf ogt, %90, %97 : vector<64x64xf32>
      %111 = arith.cmpf oeq, %90, %97 : vector<64x64xf32>
      %112 = arith.cmpi slt, %87, %88 : vector<64x64xi32>
      %113 = arith.andi %111, %112 : vector<64x64xi1>
      %114 = arith.ori %110, %113 : vector<64x64xi1>
      %cst_46 = arith.constant 1.000000e+00 : f32
      %cst_47 = arith.constant 0.000000e+00 : f32
      %115 = vector.broadcast %cst_46 : f32 to vector<64x64xf32>
      %116 = vector.broadcast %cst_47 : f32 to vector<64x64xf32>
      %117 = arith.select %114, %115, %116 : vector<64x64xi1>, vector<64x64xf32>
      %118 = vector.broadcast %8 : vector<64x1xf32> to vector<64x64xf32>
      %119 = arith.mulf %117, %118 : vector<64x64xf32>
      %cst_48 = arith.constant dense<0.000000e+00> : vector<64xf32>
      %120 = vector.multi_reduction <add>, %119, %cst_48 [0] : vector<64x64xf32> to vector<64xf32>
      %121 = vector.shape_cast %120 : vector<64xf32> to vector<1x64xf32>
      %cst_49 = arith.constant 1.600000e+01 : f32
      %122 = vector.broadcast %cst_49 : f32 to vector<64x1xf32>
      %123 = arith.cmpf olt, %109, %122 : vector<64x1xf32>
      %cst_50 = arith.constant 1.000000e+00 : f32
      %cst_51 = arith.constant 0.000000e+00 : f32
      %124 = vector.broadcast %cst_50 : f32 to vector<64x1xf32>
      %125 = vector.broadcast %cst_51 : f32 to vector<64x1xf32>
      %126 = arith.select %123, %124, %125 : vector<64x1xi1>, vector<64x1xf32>
      %127 = arith.mulf %8, %126 : vector<64x1xf32>
      %cst_52 = arith.constant 1.600000e+01 : f32
      %128 = vector.broadcast %cst_52 : f32 to vector<1x64xf32>
      %129 = arith.cmpf olt, %121, %128 : vector<1x64xf32>
      %cst_53 = arith.constant 1.000000e+00 : f32
      %cst_54 = arith.constant 0.000000e+00 : f32
      %130 = vector.broadcast %cst_53 : f32 to vector<1x64xf32>
      %131 = vector.broadcast %cst_54 : f32 to vector<1x64xf32>
      %132 = arith.select %129, %130, %131 : vector<1x64xi1>, vector<1x64xf32>
      %133 = arith.mulf %11, %132 : vector<1x64xf32>
      %c2 = arith.constant 2 : index
      %c0_55 = arith.constant 0 : index
      %c0_56 = arith.constant 0 : index
      %134 = vector.load %arg9[%c2, %c0_55, %c0_56] : memref<4x64x1xf32, #tpu.memory_space<vmem>>, vector<1x64x1xf32>
      %135 = vector.shape_cast %134 : vector<1x64x1xf32> to vector<64x1xf32>
      %136 = vector.shape_cast %127 : vector<64x1xf32> to vector<1x64x1xf32>
      tpu.vector_store %arg9[%c2, %c0_55, %c0_56], %136 {strides = array<i32>} : memref<4x64x1xf32, #tpu.memory_space<vmem>>, vector<1x64x1xf32>,
      %c2_57 = arith.constant 2 : index
      %c0_58 = arith.constant 0 : index
      %c0_59 = arith.constant 0 : index
      %137 = vector.load %arg10[%c2_57, %c0_58, %c0_59] : memref<4x1x64xf32, #tpu.memory_space<vmem>>, vector<1x1x64xf32>
      %138 = vector.shape_cast %137 : vector<1x1x64xf32> to vector<1x64xf32>
      %139 = vector.shape_cast %133 : vector<1x64xf32> to vector<1x1x64xf32>
      tpu.vector_store %arg10[%c2_57, %c0_58, %c0_59], %139 {strides = array<i32>} : memref<4x1x64xf32, #tpu.memory_space<vmem>>, vector<1x1x64xf32>,
      %140 = vector.broadcast %86 : vector<64x1xf32> to vector<64x128xf32>
      %141 = arith.mulf %61, %140 : vector<64x128xf32>
      %142 = vector.broadcast %127 : vector<64x1xf32> to vector<64x128xf32>
      %143 = arith.mulf %142, %141 : vector<64x128xf32>
      %c0_60 = arith.constant 0 : index
      %c0_61 = arith.constant 0 : index
      %144 = vector.load %arg7[%c0_60, %c0_61] : memref<64x128xf32, #tpu.memory_space<vmem>>, vector<64x128xf32>
      tpu.vector_store %arg7[%c0_60, %c0_61], %143 {strides = array<i32>} : memref<64x128xf32, #tpu.memory_space<vmem>>, vector<64x128xf32>,
    } else {
    }
    %c2_i32 = arith.constant 2 : i32
    %68 = arith.cmpi eq, %arg0, %c2_i32 : i32
    %69 = arith.extui %68 : i1 to i32
    %c0_i32_30 = arith.constant 0 : i32
    %70 = arith.cmpi ne, %69, %c0_i32_30 : i32
    scf.if %70 {
      %c2 = arith.constant 2 : index
      %c0_35 = arith.constant 0 : index
      %c0_36 = arith.constant 0 : index
      %77 = vector.load %arg8[%c2, %c0_35, %c0_36] : memref<3x64x128xf32, #tpu.memory_space<vmem>>, vector<1x64x128xf32>
      %78 = vector.shape_cast %77 : vector<1x64x128xf32> to vector<64x128xf32>
      %79 = vector.shape_cast %61 : vector<64x128xf32> to vector<1x64x128xf32>
      tpu.vector_store %arg8[%c2, %c0_35, %c0_36], %79 {strides = array<i32>} : memref<3x64x128xf32, #tpu.memory_space<vmem>>, vector<1x64x128xf32>,
      %c0_37 = arith.constant 0 : index
      %c0_38 = arith.constant 0 : index
      %c0_39 = arith.constant 0 : index
      %80 = vector.load %arg5[%c0_37, %c0_38, %c0_39] : memref<1x1x128xf32, #tpu.memory_space<vmem>>, vector<1x1x128xf32>
      %81 = vector.shape_cast %80 : vector<1x1x128xf32> to vector<1x128xf32>
      %82 = vector.broadcast %81 : vector<1x128xf32> to vector<64x128xf32>
      %83 = arith.mulf %61, %82 : vector<64x128xf32>
      %cst_40 = arith.constant dense<0.000000e+00> : vector<64xf32>
      %84 = vector.multi_reduction <add>, %83, %cst_40 [1] : vector<64x128xf32> to vector<64xf32>
      %85 = vector.shape_cast %84 : vector<64xf32> to vector<64x1xf32>
      %86 = math.tanh %85 : vector<64x1xf32>
      %87 = tpu.iota {dimensions = array<i32: 0>} : vector<64x64xi32>
      %88 = tpu.iota {dimensions = array<i32: 1>} : vector<64x64xi32>
      %89 = vector.shape_cast %86 : vector<64x1xf32> to vector<64x1xf32>
      %90 = vector.broadcast %89 : vector<64x1xf32> to vector<64x64xf32>
      %91 = arith.cmpi eq, %87, %88 : vector<64x64xi32>
      %cst_41 = arith.constant 0.000000e+00 : f32
      %92 = vector.broadcast %cst_41 : f32 to vector<64x64xf32>
      %93 = arith.select %91, %90, %92 : vector<64x64xi1>, vector<64x64xf32>
      %cst_42 = arith.constant dense<0.000000e+00> : vector<64xf32>
      %94 = vector.multi_reduction <add>, %93, %cst_42 [0] : vector<64x64xf32> to vector<64xf32>
      %95 = vector.shape_cast %94 : vector<64xf32> to vector<1x64xf32>
      %96 = vector.shape_cast %95 : vector<1x64xf32> to vector<1x64xf32>
      %97 = vector.broadcast %96 : vector<1x64xf32> to vector<64x64xf32>
      %98 = arith.cmpf ogt, %97, %90 : vector<64x64xf32>
      %99 = arith.cmpf oeq, %97, %90 : vector<64x64xf32>
      %100 = arith.cmpi slt, %88, %87 : vector<64x64xi32>
      %101 = arith.andi %99, %100 : vector<64x64xi1>
      %102 = arith.ori %98, %101 : vector<64x64xi1>
      %cst_43 = arith.constant 1.000000e+00 : f32
      %cst_44 = arith.constant 0.000000e+00 : f32
      %103 = vector.broadcast %cst_43 : f32 to vector<64x64xf32>
      %104 = vector.broadcast %cst_44 : f32 to vector<64x64xf32>
      %105 = arith.select %102, %103, %104 : vector<64x64xi1>, vector<64x64xf32>
      %106 = vector.broadcast %11 : vector<1x64xf32> to vector<64x64xf32>
      %107 = arith.mulf %105, %106 : vector<64x64xf32>
      %cst_45 = arith.constant dense<0.000000e+00> : vector<64xf32>
      %108 = vector.multi_reduction <add>, %107, %cst_45 [1] : vector<64x64xf32> to vector<64xf32>
      %109 = vector.shape_cast %108 : vector<64xf32> to vector<64x1xf32>
      %110 = arith.cmpf ogt, %90, %97 : vector<64x64xf32>
      %111 = arith.cmpf oeq, %90, %97 : vector<64x64xf32>
      %112 = arith.cmpi slt, %87, %88 : vector<64x64xi32>
      %113 = arith.andi %111, %112 : vector<64x64xi1>
      %114 = arith.ori %110, %113 : vector<64x64xi1>
      %cst_46 = arith.constant 1.000000e+00 : f32
      %cst_47 = arith.constant 0.000000e+00 : f32
      %115 = vector.broadcast %cst_46 : f32 to vector<64x64xf32>
      %116 = vector.broadcast %cst_47 : f32 to vector<64x64xf32>
      %117 = arith.select %114, %115, %116 : vector<64x64xi1>, vector<64x64xf32>
      %118 = vector.broadcast %8 : vector<64x1xf32> to vector<64x64xf32>
      %119 = arith.mulf %117, %118 : vector<64x64xf32>
      %cst_48 = arith.constant dense<0.000000e+00> : vector<64xf32>
      %120 = vector.multi_reduction <add>, %119, %cst_48 [0] : vector<64x64xf32> to vector<64xf32>
      %121 = vector.shape_cast %120 : vector<64xf32> to vector<1x64xf32>
      %cst_49 = arith.constant 8.000000e+00 : f32
      %122 = vector.broadcast %cst_49 : f32 to vector<64x1xf32>
      %123 = arith.cmpf olt, %109, %122 : vector<64x1xf32>
      %cst_50 = arith.constant 1.000000e+00 : f32
      %cst_51 = arith.constant 0.000000e+00 : f32
      %124 = vector.broadcast %cst_50 : f32 to vector<64x1xf32>
      %125 = vector.broadcast %cst_51 : f32 to vector<64x1xf32>
      %126 = arith.select %123, %124, %125 : vector<64x1xi1>, vector<64x1xf32>
      %127 = arith.mulf %8, %126 : vector<64x1xf32>
      %cst_52 = arith.constant 8.000000e+00 : f32
      %128 = vector.broadcast %cst_52 : f32 to vector<1x64xf32>
      %129 = arith.cmpf olt, %121, %128 : vector<1x64xf32>
      %cst_53 = arith.constant 1.000000e+00 : f32
      %cst_54 = arith.constant 0.000000e+00 : f32
      %130 = vector.broadcast %cst_53 : f32 to vector<1x64xf32>
      %131 = vector.broadcast %cst_54 : f32 to vector<1x64xf32>
      %132 = arith.select %129, %130, %131 : vector<1x64xi1>, vector<1x64xf32>
      %133 = arith.mulf %11, %132 : vector<1x64xf32>
      %c3 = arith.constant 3 : index
      %c0_55 = arith.constant 0 : index
      %c0_56 = arith.constant 0 : index
      %134 = vector.load %arg9[%c3, %c0_55, %c0_56] : memref<4x64x1xf32, #tpu.memory_space<vmem>>, vector<1x64x1xf32>
      %135 = vector.shape_cast %134 : vector<1x64x1xf32> to vector<64x1xf32>
      %136 = vector.shape_cast %127 : vector<64x1xf32> to vector<1x64x1xf32>
      tpu.vector_store %arg9[%c3, %c0_55, %c0_56], %136 {strides = array<i32>} : memref<4x64x1xf32, #tpu.memory_space<vmem>>, vector<1x64x1xf32>,
      %c3_57 = arith.constant 3 : index
      %c0_58 = arith.constant 0 : index
      %c0_59 = arith.constant 0 : index
      %137 = vector.load %arg10[%c3_57, %c0_58, %c0_59] : memref<4x1x64xf32, #tpu.memory_space<vmem>>, vector<1x1x64xf32>
      %138 = vector.shape_cast %137 : vector<1x1x64xf32> to vector<1x64xf32>
      %139 = vector.shape_cast %133 : vector<1x64xf32> to vector<1x1x64xf32>
      tpu.vector_store %arg10[%c3_57, %c0_58, %c0_59], %139 {strides = array<i32>} : memref<4x1x64xf32, #tpu.memory_space<vmem>>, vector<1x1x64xf32>,
      %140 = vector.broadcast %86 : vector<64x1xf32> to vector<64x128xf32>
      %141 = arith.mulf %61, %140 : vector<64x128xf32>
      %142 = vector.broadcast %127 : vector<64x1xf32> to vector<64x128xf32>
      %143 = arith.mulf %142, %141 : vector<64x128xf32>
      %c0_60 = arith.constant 0 : index
      %c0_61 = arith.constant 0 : index
      %144 = vector.load %arg7[%c0_60, %c0_61] : memref<64x128xf32, #tpu.memory_space<vmem>>, vector<64x128xf32>
      tpu.vector_store %arg7[%c0_60, %c0_61], %143 {strides = array<i32>} : memref<64x128xf32, #tpu.memory_space<vmem>>, vector<64x128xf32>,
    } else {
    }
    %c3_i32_31 = arith.constant 3 : i32
    %71 = arith.cmpi sge, %arg0, %c3_i32_31 : i32
    %72 = arith.extui %71 : i1 to i32
    %c0_i32_32 = arith.constant 0 : i32
    %73 = arith.cmpi ne, %72, %c0_i32_32 : i32
    scf.if %73 {
      %c0_35 = arith.constant 0 : index
      %c0_36 = arith.constant 0 : index
      %77 = vector.load %arg7[%c0_35, %c0_36] : memref<64x128xf32, #tpu.memory_space<vmem>>, vector<64x128xf32>
      tpu.vector_store %arg7[%c0_35, %c0_36], %61 {strides = array<i32>} : memref<64x128xf32, #tpu.memory_space<vmem>>, vector<64x128xf32>,
    } else {
    }
    %c6_i32_33 = arith.constant 6 : i32
    %74 = arith.cmpi eq, %arg0, %c6_i32_33 : i32
    %75 = arith.extui %74 : i1 to i32
    %c0_i32_34 = arith.constant 0 : i32
    %76 = arith.cmpi ne, %75, %c0_i32_34 : i32
    scf.if %76 {
      %77 = tpu.iota {dimensions = array<i32: 1>} : vector<64x128xi32>
      %c8_i32 = arith.constant 8 : i32
      %78 = vector.broadcast %c8_i32 : i32 to vector<64x128xi32>
      %79 = arith.cmpi slt, %77, %78 : vector<64x128xi32>
      %cst_35 = arith.constant -1.000000e+30 : f32
      %80 = vector.broadcast %cst_35 : f32 to vector<64x128xf32>
      %81 = arith.select %79, %59, %80 : vector<64x128xi1>, vector<64x128xf32>
      %cst_36 = arith.constant dense<0xFF800000> : vector<64xf32>
      %82 = vector.multi_reduction <maximumf>, %81, %cst_36 [1] : vector<64x128xf32> to vector<64xf32>
      %83 = vector.shape_cast %82 : vector<64xf32> to vector<64x1xf32>
      %84 = vector.broadcast %83 : vector<64x1xf32> to vector<64x128xf32>
      %85 = arith.subf %81, %84 : vector<64x128xf32>
      %86 = math.exp %85 : vector<64x128xf32>
      %cst_37 = arith.constant dense<0.000000e+00> : vector<64xf32>
      %87 = vector.multi_reduction <add>, %86, %cst_37 [1] : vector<64x128xf32> to vector<64xf32>
      %88 = vector.shape_cast %87 : vector<64xf32> to vector<64x1xf32>
      %89 = math.log %88 : vector<64x1xf32>
      %90 = arith.addf %83, %89 : vector<64x1xf32>
      %91 = vector.broadcast %90 : vector<64x1xf32> to vector<64x128xf32>
      %92 = arith.subf %81, %91 : vector<64x128xf32>
      %cst_38 = arith.constant 0.000000e+00 : f32
      %93 = vector.broadcast %cst_38 : f32 to vector<64x128xf32>
      %94 = arith.select %79, %92, %93 : vector<64x128xi1>, vector<64x128xf32>
      %c0_39 = arith.constant 0 : index
      %c0_40 = arith.constant 0 : index
      %95 = vector.load %arg6[%c0_39, %c0_40] : memref<64x128xf32, #tpu.memory_space<vmem>>, vector<64x128xf32>
      tpu.vector_store %arg6[%c0_39, %c0_40], %94 {strides = array<i32>} : memref<64x128xf32, #tpu.memory_space<vmem>>, vector<64x128xf32>,
    } else {
    }
    return
  }
  func.func @transform_0(%arg0: i32) -> (i32, i32) {
    %c0_i32 = arith.constant 0 : i32
    %c0_i32_0 = arith.constant 0 : i32
    %c0_i32_1 = arith.constant 0 : i32
    return %c0_i32, %c0_i32_0 : i32, i32
  }
  func.func @transform_1(%arg0: i32) -> (i32, i32) {
    %c0_i32 = arith.constant 0 : i32
    %c0_i32_0 = arith.constant 0 : i32
    %c0_i32_1 = arith.constant 0 : i32
    return %c0_i32, %c0_i32_0 : i32, i32
  }
  func.func @transform_2(%arg0: i32) -> (i32, i32, i32) {
    %c0_i32 = arith.constant 0 : i32
    %c0_i32_0 = arith.constant 0 : i32
    %c0_i32_1 = arith.constant 0 : i32
    return %arg0, %c0_i32, %c0_i32_0 : i32, i32, i32
  }
  func.func @transform_3(%arg0: i32) -> (i32, i32, i32) {
    %c0_i32 = arith.constant 0 : i32
    %c0_i32_0 = arith.constant 0 : i32
    %c0_i32_1 = arith.constant 0 : i32
    return %arg0, %c0_i32, %c0_i32_0 : i32, i32, i32
  }
  func.func @transform_4(%arg0: i32) -> (i32, i32, i32) {
    %c0_i32 = arith.constant 0 : i32
    %c0_i32_0 = arith.constant 0 : i32
    %c0_i32_1 = arith.constant 0 : i32
    return %arg0, %c0_i32, %c0_i32_0 : i32, i32, i32
  }
  func.func @transform_5(%arg0: i32) -> (i32, i32) {
    %c0_i32 = arith.constant 0 : i32
    %c0_i32_0 = arith.constant 0 : i32
    %c0_i32_1 = arith.constant 0 : i32
    return %c0_i32, %c0_i32_0 : i32, i32
  }
}

</mosaic_0001>

<llo_original>
// kernel: graph_unet_forward.1
$region0: #{graph_unet_forward.1}
  #allocation0 [shape = 'u32[]', space=smem, size = 0x4, offset = 0x4, fixed_abs, tag = 'smem constant byte address 0x4 - core index']
  #allocation1 [shape = 'u32[144,128]{1,0:T(1,128)}', space=vmem, size = 0x12000, scoped, tag = 'internal scratch']
  #allocation2 [shape = 'f32[64,128]{1,0:T(8,128)}', space=vmem, size = 0x8000, scoped, tag = 'scratch operand']
  #allocation3 [shape = 'f32[3,64,128]{2,1,0:T(8,128)}', space=vmem, size = 0x18000, scoped, tag = 'scratch operand']
  #allocation4 [shape = 'f32[4,64,1]{2,1,0:T(8,128)}', space=vmem, size = 0x20000, scoped, tag = 'scratch operand']
  #allocation5 [shape = 'f32[4,1,64]{2,1,0:T(1,128)}', space=vmem, size = 0x800, scoped, tag = 'scratch operand']
  %s0 = inlined_call_operand.vmem [shape: f32[64,64], index: 0, kind: input, shape index: {}]
  %s1 = inlined_call_operand.vmem [shape: f32[64,128], index: 1, kind: input, shape index: {}]
  %s2 = inlined_call_operand.hbm [shape: f32[7,128,128], index: 2, kind: input, shape index: {}]
  %s3 = inlined_call_operand.vmem [shape: f32[7,1,128], index: 3, kind: input, shape index: {}]
  %s4 = inlined_call_operand.vmem [shape: f32[7,1,128], index: 4, kind: input, shape index: {}]
  %s5 = inlined_call_operand.vmem [shape: f32[64,128], index: 5, kind: output, shape index: {}]
  %s6 = sld [smem:[#allocation0]]
  $region81: #{graph_unet_forward.1} parent=0
    _
  %s8 = ssub.s32 1, %s6
  %s9 = scalar_select 0, %s8, %s6
  $region1: #{graph_unet_forward.1} parent=0
    #allocation6 [shape = 'u8[131072]{0}', space=vmem, size = 0x20000, scoped, tag = 'input window, operand 2']
    #allocation7 [shape = 's32[2]{0}', space=sflag, size = 0x8, scoped, tag = 'scoped memory for graph_unet_forward.1']
    %10 = vsyncpa [#allocation7], 0
    %s11 = scalar_lea.sflag [#allocation7], 1
    %12 = vsyncpa %s11, 0
    loop: start=0, step=1, limit=9
    $region2: #{graph_unet_forward.1} parent=1 // loop_pre_header
      _
    $region3: #{graph_unet_forward.1} parent=1 // loop_header
      %s14 = sphi 0, %s18
      %p15 = scmp.ge.s32.totalorder %s14, 9
      %s22 = sphi 0, %s22
      %s24 = sphi 0, %s22
      %s25 = sphi 0, %s24
      %s39 = sphi 0, %s25
      %s43 = sphi 0, %s43
      %s45 = sphi 0, %s43
      %s46 = sphi 0, %s45
      %s60 = sphi 0, %s46
      %s66 = sphi 0, %s68
      %s69 = sphi 0, %s66
      %s70 = sphi 0, %s69
      %s86 = sphi 0, %s70
      %s92 = sphi 0, %s94
      %s95 = sphi 0, %s92
      %s96 = sphi 0, %s95
      %s112 = sphi 0, %s96
      %s118 = sphi 0, %s120
      %s121 = sphi 0, %s118
      %s122 = sphi 0, %s121
      %s138 = sphi 0, %s122
      %s142 = sphi 0, %s142
      %s144 = sphi 0, %s142
      %s145 = sphi 0, %s144
      %s159 = sphi 0, %s145
    $region4: #{graph_unet_forward.1} parent=1 // loop_header_branch
      %17 = sbr.rel (%p15) target = $region8
    $region5: #{graph_unet_forward.1} parent=1 // loop_body
      %s19 = ssub.s32 %s14, 1
      %s20 = ssub.s32 %s14, 2
      %s21 = sadd.s32 %s14, 1
      %s23 = sadd.s32 %s22, 1
      %p26 = scmp.eq.s32.totalorder %s14, 6
      %p27 = scmp.ne.s32.totalorder %s22, %s24
      %p28 = scmp.eq.s32.totalorder %s14, 0
      %p29 = por %p27, %p28
      %p30 = scmp.ne.s32.totalorder %s22, %s24
      %p31 = scmp.eq.s32.totalorder %s19, 6
      %p32 = por %p30, %p31
      %p33 = scmp.ne.s32.totalorder %s24, %s25
      %p34 = scmp.eq.s32.totalorder %s19, 0
      %p35 = por %p33, %p34
      %p36 = scmp.ne.s32.totalorder %s24, %s25
      %p37 = scmp.eq.s32.totalorder %s20, 6
      %p38 = por %p36, %p37
      %p40 = scmp.ne.s32.totalorder %s25, %s39
      %p41 = scmp.eq.s32.totalorder %s20, 0
      %p42 = por %p40, %p41
      %s44 = sadd.s32 %s43, 1
      %p47 = scmp.eq.s32.totalorder %s14, 6
      %p48 = scmp.ne.s32.totalorder %s43, %s45
      %p49 = scmp.eq.s32.totalorder %s14, 0
      %p50 = por %p48, %p49
      %p51 = scmp.ne.s32.totalorder %s43, %s45
      %p52 = scmp.eq.s32.totalorder %s19, 6
      %p53 = por %p51, %p52
      %p54 = scmp.ne.s32.totalorder %s45, %s46
      %p55 = scmp.eq.s32.totalorder %s19, 0
      %p56 = por %p54, %p55
      %p57 = scmp.ne.s32.totalorder %s45, %s46
      %p58 = scmp.eq.s32.totalorder %s20, 6
      %p59 = por %p57, %p58
      %p61 = scmp.ne.s32.totalorder %s46, %s60
      %p62 = scmp.eq.s32.totalorder %s20, 0
      %p63 = por %p61, %p62
      %s64 = ssub.s32 %s14, %s21
      %p65 = scmp.eq.s32.totalorder %s64, 0
      %s67 = sadd.s32 %s66, 1
      %s68 = scalar_select %p65, %s66, %s67
      %p71 = pneg %p65
      %p72 = scmp.eq.s32.totalorder %s14, 6
      %p73 = por %p71, %p72
      %p74 = scmp.ne.s32.totalorder %s66, %s69
      %p75 = scmp.eq.s32.totalorder %s14, 0
      %p76 = por %p74, %p75
      %p77 = scmp.ne.s32.totalorder %s66, %s69
      %p78 = scmp.eq.s32.totalorder %s19, 6
      %p79 = por %p77, %p78
      %p80 = scmp.ne.s32.totalorder %s69, %s70
      %p81 = scmp.eq.s32.totalorder %s19, 0
      %p82 = por %p80, %p81
      %p83 = scmp.ne.s32.totalorder %s69, %s70
      %p84 = scmp.eq.s32.totalorder %s20, 6
      %p85 = por %p83, %p84
      %p87 = scmp.ne.s32.totalorder %s70, %s86
      %p88 = scmp.eq.s32.totalorder %s20, 0
      %p89 = por %p87, %p88
      %s90 = ssub.s32 %s14, %s21
      %p91 = scmp.eq.s32.totalorder %s90, 0
      %s93 = sadd.s32 %s92, 1
      %s94 = scalar_select %p91, %s92, %s93
      %p97 = pneg %p91
      %p98 = scmp.eq.s32.totalorder %s14, 6
      %p99 = por %p97, %p98
      %p100 = scmp.ne.s32.totalorder %s92, %s95
      %p101 = scmp.eq.s32.totalorder %s14, 0
      %p102 = por %p100, %p101
      %p103 = scmp.ne.s32.totalorder %s92, %s95
      %p104 = scmp.eq.s32.totalorder %s19, 6
      %p105 = por %p103, %p104
      %p106 = scmp.ne.s32.totalorder %s95, %s96
      %p107 = scmp.eq.s32.totalorder %s19, 0
      %p108 = por %p106, %p107
      %p109 = scmp.ne.s32.totalorder %s95, %s96
      %p110 = scmp.eq.s32.totalorder %s20, 6
      %p111 = por %p109, %p110
      %p113 = scmp.ne.s32.totalorder %s96, %s112
      %p114 = scmp.eq.s32.totalorder %s20, 0
      %p115 = por %p113, %p114
      %s116 = ssub.s32 %s14, %s21
      %p117 = scmp.eq.s32.totalorder %s116, 0
      %s119 = sadd.s32 %s118, 1
      %s120 = scalar_select %p117, %s118, %s119
      %p123 = pneg %p117
      %p124 = scmp.eq.s32.totalorder %s14, 6
      %p125 = por %p123, %p124
      %p126 = scmp.ne.s32.totalorder %s118, %s121
      %p127 = scmp.eq.s32.totalorder %s14, 0
      %p128 = por %p126, %p127
      %p129 = scmp.ne.s32.totalorder %s118, %s121
      %p130 = scmp.eq.s32.totalorder %s19, 6
      %p131 = por %p129, %p130
      %p132 = scmp.ne.s32.totalorder %s121, %s122
      %p133 = scmp.eq.s32.totalorder %s19, 0
      %p134 = por %p132, %p133
      %p135 = scmp.ne.s32.totalorder %s121, %s122
      %p136 = scmp.eq.s32.totalorder %s20, 6
      %p137 = por %p135, %p136
      %p139 = scmp.ne.s32.totalorder %s122, %s138
      %p140 = scmp.eq.s32.totalorder %s20, 0
      %p141 = por %p139, %p140
      %s143 = sadd.s32 %s142, 1
      %p146 = scmp.eq.s32.totalorder %s14, 6
      %p147 = scmp.ne.s32.totalorder %s142, %s144
      %p148 = scmp.eq.s32.totalorder %s14, 0
      %p149 = por %p147, %p148
      %p150 = scmp.ne.s32.totalorder %s142, %s144
      %p151 = scmp.eq.s32.totalorder %s19, 6
      %p152 = por %p150, %p151
      %p153 = scmp.ne.s32.totalorder %s144, %s145
      %p154 = scmp.eq.s32.totalorder %s19, 0
      %p155 = por %p153, %p154
      %p156 = scmp.ne.s32.totalorder %s144, %s145
      %p157 = scmp.eq.s32.totalorder %s20, 6
      %p158 = por %p156, %p157
      %p160 = scmp.ne.s32.totalorder %s145, %s159
      %p161 = scmp.eq.s32.totalorder %s20, 0
      %p162 = por %p160, %p161
      %p163 = scmp.le.s32.totalorder 1, %s14
      %p164 = scmp.lt.s32.totalorder %s14, 8
      %p165 = pnand %p163, %p164
      %p166 = pneg %p165
      // Predicated region
      $region9: #{graph_unet_forward.1} parent=5 // pred_check
        _
      $region10: #{graph_unet_forward.1} parent=5 // pred_check_branch
        %168 = sbr.rel (%p165) target = $region12
      $region11: #{graph_unet_forward.1} parent=5 // pred_region
        %s169 = ssub.s32 %s14, 1
        // Predicated region
        $region13: #{graph_unet_forward.1} parent=11 // pred_check
          %p170 = pneg %p35
        $region14: #{graph_unet_forward.1} parent=11 // pred_check_branch
          %172 = sbr.rel (%p170) target = $region16
        $region15: #{graph_unet_forward.1} parent=11 // pred_region
          _
        $region16: #{graph_unet_forward.1} parent=11 // pred_fallthru
          _
        // Predicated region
        $region17: #{graph_unet_forward.1} parent=11 // pred_check
          %p173 = pneg %p56
        $region18: #{graph_unet_forward.1} parent=11 // pred_check_branch
          %175 = sbr.rel (%p173) target = $region20
        $region19: #{graph_unet_forward.1} parent=11 // pred_region
          _
        $region20: #{graph_unet_forward.1} parent=11 // pred_fallthru
          _
      $region12: #{graph_unet_forward.1} parent=5 // pred_fallthru
        _
      %p176 = scmp.lt.s32.totalorder %s14, 7
      // Predicated region
      $region21: #{graph_unet_forward.1} parent=5 // pred_check
        %p177 = pneg %p176
      $region22: #{graph_unet_forward.1} parent=5 // pred_check_branch
        %179 = sbr.rel (%p177) target = $region24
      $region23: #{graph_unet_forward.1} parent=5 // pred_region
        // Predicated region
        $region25: #{graph_unet_forward.1} parent=23 // pred_check
          %p180 = pneg %p76
        $region26: #{graph_unet_forward.1} parent=23 // pred_check_branch
          %182 = sbr.rel (%p180) target = $region28
        $region27: #{graph_unet_forward.1} parent=23 // pred_region
          %s183 = sand.u32 %s66, 1
          %s184 = scalar_lea.sflag [#allocation7], %s183
          %s185 = sand.u32 %s66, 1
          %s186 = smul.addr %s185, 128
          %s187 = scalar_lea.vmem [#allocation6], %s186
          %s189 = ssub.s32 2048, 2048
          %190 = vsyncadd %s184, %s189
          %s191 = smul.addr %s14, 16
          %s192 = smul.addr %s191, 128
          %s193 = scalar_lea.hbm %s2, %s192
          %s194 = sshll.u32 %s187, 4
          %s195 = int_to_ptr.vmem [resolvable:$true] %s194
          %200 = dma.hbm_to_vmem [thread:$0]  %s193, 2048, %s195, %s184, 128, 128, 8
        $region28: #{graph_unet_forward.1} parent=23 // pred_fallthru
          _
        // Predicated region
        $region29: #{graph_unet_forward.1} parent=23 // pred_check
          %p201 = pneg %p102
        $region30: #{graph_unet_forward.1} parent=23 // pred_check_branch
          %203 = sbr.rel (%p201) target = $region32
        $region31: #{graph_unet_forward.1} parent=23 // pred_region
          %p204 = scmp.lt.s32.totalorder %s14, 6
          %s205 = scalar_select %p204, %s14, 6
          %s206 = scalar_lea.vmem %s3, %s205
        $region32: #{graph_unet_forward.1} parent=23 // pred_fallthru
          _
        // Predicated region
        $region33: #{graph_unet_forward.1} parent=23 // pred_check
          %p207 = pneg %p128
        $region34: #{graph_unet_forward.1} parent=23 // pred_check_branch
          %209 = sbr.rel (%p207) target = $region36
        $region35: #{graph_unet_forward.1} parent=23 // pred_region
          %p210 = scmp.lt.s32.totalorder %s14, 6
          %s211 = scalar_select %p210, %s14, 6
          %s212 = scalar_lea.vmem %s4, %s211
        $region36: #{graph_unet_forward.1} parent=23 // pred_fallthru
          _
      $region24: #{graph_unet_forward.1} parent=5 // pred_fallthru
        _
      %p213 = scmp.le.s32.totalorder 1, %s14
      %p214 = scmp.lt.s32.totalorder %s14, 8
      %p215 = pnand %p213, %p214
      %p216 = pneg %p215
      // Predicated region
      $region37: #{graph_unet_forward.1} parent=5 // pred_check
        _
      $region38: #{graph_unet_forward.1} parent=5 // pred_check_branch
        %218 = sbr.rel (%p215) target = $region40
      $region39: #{graph_unet_forward.1} parent=5 // pred_region
        %s219 = ssub.s32 %s14, 1
        %s220 = sand.u32 %s69, 1
        %s221 = scalar_lea.sflag [#allocation7], %s220
        %s222 = sand.u32 %s69, 1
        %s223 = smul.addr %s222, 128
        %s224 = scalar_lea.vmem [#allocation6], %s223
        // Predicated region
        $region41: #{graph_unet_forward.1} parent=39 // pred_check
          %p225 = pneg %p82
        $region42: #{graph_unet_forward.1} parent=39 // pred_check_branch
          %227 = sbr.rel (%p225) target = $region44
        $region43: #{graph_unet_forward.1} parent=39 // pred_region
          %228 = dma.done %s221, 2048
        $region44: #{graph_unet_forward.1} parent=39 // pred_fallthru
          _
        %p229 = pneg %p35
        %p230 = pneg %p32
        %p231 = pneg %p56
        %p232 = pneg %p53
        %s233 = sand.u32 %s69, 1
        %s234 = scalar_lea.sflag [#allocation7], %s233
        %s235 = sand.u32 %s69, 1
        %s236 = smul.addr %s235, 128
        %s237 = scalar_lea.vmem [#allocation6], %s236
        %p238 = pneg %p82
        %p239 = pneg %p79
        %p240 = scmp.lt.s32.totalorder %s19, 6
        %s241 = scalar_select %p240, %s19, 6
        %s242 = scalar_lea.vmem %s3, %s241
        %p243 = pneg %p108
        %p244 = pneg %p105
        %p245 = scmp.lt.s32.totalorder %s19, 6
        %s246 = scalar_select %p245, %s19, 6
        %s247 = scalar_lea.vmem %s4, %s246
        %p248 = pneg %p134
        %p249 = pneg %p131
        %p250 = pneg %p155
        %p251 = pneg %p152
        %p252 = scmp.lt.s32.totalorder %s19, 6
        %s253 = scalar_select %p252, %s19, 6
        %s254 = scalar_lea.vmem %s3, %s253
        %p255 = scmp.lt.s32.totalorder %s19, 6
        %s256 = scalar_select %p255, %s19, 6
        %s257 = scalar_lea.vmem %s4, %s256
        %p258 = scmp.eq.s32.totalorder %s19, 0
        // Predicated region
        $region45: #{graph_unet_forward.1} parent=39 // pred_check
          %p259 = pneg %p258
        $region46: #{graph_unet_forward.1} parent=39 // pred_check_branch
          %261 = sbr.rel (%p259) target = $region48
        $region47: #{graph_unet_forward.1} parent=39 // pred_region
          %v262 = vld [vmem:[%s1] sm:$0xff]
          %v263 = vld [vmem:[%s1 + $0x8] sm:$0xff]
          %v264 = vld [vmem:[%s1 + $0x10] sm:$0xff]
          %v265 = vld [vmem:[%s1 + $0x18] sm:$0xff]
          %v266 = vld [vmem:[%s1 + $0x20] sm:$0xff]
          %v267 = vld [vmem:[%s1 + $0x28] sm:$0xff]
          %v268 = vld [vmem:[%s1 + $0x30] sm:$0xff]
          %v269 = vld [vmem:[%s1 + $0x38] sm:$0xff]
          %270 = vst [vmem:[#allocation2] sm:$0xff] %v262
          %271 = vst [vmem:[#allocation2 + $0x8] sm:$0xff] %v263
          %272 = vst [vmem:[#allocation2 + $0x10] sm:$0xff] %v264
          %273 = vst [vmem:[#allocation2 + $0x18] sm:$0xff] %v265
          %274 = vst [vmem:[#allocation2 + $0x20] sm:$0xff] %v266
          %275 = vst [vmem:[#allocation2 + $0x28] sm:$0xff] %v267
          %276 = vst [vmem:[#allocation2 + $0x30] sm:$0xff] %v268
          %277 = vst [vmem:[#allocation2 + $0x38] sm:$0xff] %v269
          %278 = vst [vmem:[#allocation3] sm:$0xff] 0.0
          %279 = vst [vmem:[#allocation3 + $0x8] sm:$0xff] 0.0
          %280 = vst [vmem:[#allocation3 + $0x10] sm:$0xff] 0.0
          %281 = vst [vmem:[#allocation3 + $0x18] sm:$0xff] 0.0
          %282 = vst [vmem:[#allocation3 + $0x20] sm:$0xff] 0.0
          %283 = vst [vmem:[#allocation3 + $0x28] sm:$0xff] 0.0
          %284 = vst [vmem:[#allocation3 + $0x30] sm:$0xff] 0.0
          %285 = vst [vmem:[#allocation3 + $0x38] sm:$0xff] 0.0
          %286 = vst [vmem:[#allocation3 + $0x40] sm:$0xff] 0.0
          %287 = vst [vmem:[#allocation3 + $0x48] sm:$0xff] 0.0
          %288 = vst [vmem:[#allocation3 + $0x50] sm:$0xff] 0.0
          %289 = vst [vmem:[#allocation3 + $0x58] sm:$0xff] 0.0
          %290 = vst [vmem:[#allocation3 + $0x60] sm:$0xff] 0.0
          %291 = vst [vmem:[#allocation3 + $0x68] sm:$0xff] 0.0
          %292 = vst [vmem:[#allocation3 + $0x70] sm:$0xff] 0.0
          %293 = vst [vmem:[#allocation3 + $0x78] sm:$0xff] 0.0
          %294 = vst [vmem:[#allocation3 + $0x80] sm:$0xff] 0.0
          %295 = vst [vmem:[#allocation3 + $0x88] sm:$0xff] 0.0
          %296 = vst [vmem:[#allocation3 + $0x90] sm:$0xff] 0.0
          %297 = vst [vmem:[#allocation3 + $0x98] sm:$0xff] 0.0
          %298 = vst [vmem:[#allocation3 + $0xa0] sm:$0xff] 0.0
          %299 = vst [vmem:[#allocation3 + $0xa8] sm:$0xff] 0.0
          %300 = vst [vmem:[#allocation3 + $0xb0] sm:$0xff] 0.0
          %301 = vst [vmem:[#allocation3 + $0xb8] sm:$0xff] 0.0
          %vm302 = vcmask 7168
          %303 = vst.msk [vmem:[#allocation4] sm:$0xff] %vm302, 0.0
          %304 = vst.msk [vmem:[#allocation4 + $0x8] sm:$0xff] %vm302, 0.0
          %305 = vst.msk [vmem:[#allocation4 + $0x10] sm:$0xff] %vm302, 0.0
          %306 = vst.msk [vmem:[#allocation4 + $0x18] sm:$0xff] %vm302, 0.0
          %307 = vst.msk [vmem:[#allocation4 + $0x20] sm:$0xff] %vm302, 0.0
          %308 = vst.msk [vmem:[#allocation4 + $0x28] sm:$0xff] %vm302, 0.0
          %309 = vst.msk [vmem:[#allocation4 + $0x30] sm:$0xff] %vm302, 0.0
          %310 = vst.msk [vmem:[#allocation4 + $0x38] sm:$0xff] %vm302, 0.0
          %311 = vst.msk [vmem:[#allocation4 + $0x40] sm:$0xff] %vm302, 0.0
          %312 = vst.msk [vmem:[#allocation4 + $0x48] sm:$0xff] %vm302, 0.0
          %313 = vst.msk [vmem:[#allocation4 + $0x50] sm:$0xff] %vm302, 0.0
          %314 = vst.msk [vmem:[#allocation4 + $0x58] sm:$0xff] %vm302, 0.0
          %315 = vst.msk [vmem:[#allocation4 + $0x60] sm:$0xff] %vm302, 0.0
          %316 = vst.msk [vmem:[#allocation4 + $0x68] sm:$0xff] %vm302, 0.0
          %317 = vst.msk [vmem:[#allocation4 + $0x70] sm:$0xff] %vm302, 0.0
          %318 = vst.msk [vmem:[#allocation4 + $0x78] sm:$0xff] %vm302, 0.0
          %319 = vst.msk [vmem:[#allocation4 + $0x80] sm:$0xff] %vm302, 0.0
          %320 = vst.msk [vmem:[#allocation4 + $0x88] sm:$0xff] %vm302, 0.0
          %321 = vst.msk [vmem:[#allocation4 + $0x90] sm:$0xff] %vm302, 0.0
          %322 = vst.msk [vmem:[#allocation4 + $0x98] sm:$0xff] %vm302, 0.0
          %323 = vst.msk [vmem:[#allocation4 + $0xa0] sm:$0xff] %vm302, 0.0
          %324 = vst.msk [vmem:[#allocation4 + $0xa8] sm:$0xff] %vm302, 0.0
          %325 = vst.msk [vmem:[#allocation4 + $0xb0] sm:$0xff] %vm302, 0.0
          %326 = vst.msk [vmem:[#allocation4 + $0xb8] sm:$0xff] %vm302, 0.0
          %327 = vst.msk [vmem:[#allocation4 + $0xc0] sm:$0xff] %vm302, 0.0
          %328 = vst.msk [vmem:[#allocation4 + $0xc8] sm:$0xff] %vm302, 0.0
          %329 = vst.msk [vmem:[#allocation4 + $0xd0] sm:$0xff] %vm302, 0.0
          %330 = vst.msk [vmem:[#allocation4 + $0xd8] sm:$0xff] %vm302, 0.0
          %331 = vst.msk [vmem:[#allocation4 + $0xe0] sm:$0xff] %vm302, 0.0
          %332 = vst.msk [vmem:[#allocation4 + $0xe8] sm:$0xff] %vm302, 0.0
          %333 = vst.msk [vmem:[#allocation4 + $0xf0] sm:$0xff] %vm302, 0.0
          %334 = vst.msk [vmem:[#allocation4 + $0xf8] sm:$0xff] %vm302, 0.0
          %vm335 = vcmask 516096
          %336 = vst.msk [vmem:[#allocation5] sm:$0x1] %vm335, 0.0
          %337 = vst.msk [vmem:[#allocation5 + $0x1] sm:$0x1] %vm335, 0.0
          %338 = vst.msk [vmem:[#allocation5 + $0x2] sm:$0x1] %vm335, 0.0
          %339 = vst.msk [vmem:[#allocation5 + $0x3] sm:$0x1] %vm335, 0.0
          %340 = vst.msk [vmem:[#allocation4] sm:$0xff] %vm302, 1.0
          %341 = vst.msk [vmem:[#allocation4 + $0x8] sm:$0xff] %vm302, 1.0
          %342 = vst.msk [vmem:[#allocation4 + $0x10] sm:$0xff] %vm302, 1.0
          %343 = vst.msk [vmem:[#allocation4 + $0x18] sm:$0xff] %vm302, 1.0
          %344 = vst.msk [vmem:[#allocation4 + $0x20] sm:$0xff] %vm302, 1.0
          %345 = vst.msk [vmem:[#allocation4 + $0x28] sm:$0xff] %vm302, 1.0
          %346 = vst.msk [vmem:[#allocation4 + $0x30] sm:$0xff] %vm302, 1.0
          %347 = vst.msk [vmem:[#allocation4 + $0x38] sm:$0xff] %vm302, 1.0
          %348 = vst.msk [vmem:[#allocation5] sm:$0x1] %vm335, 1.0
        $region48: #{graph_unet_forward.1} parent=39 // pred_fallthru
          _
        %p349 = scmp.gt.s32.totalorder %s19, 3
        %s350 = ssub.s32 6, %s19
        %s351 = scalar_select %p349, %s350, %s19
        %s352 = smul.u32 %s351, 64
        %s353 = scalar_lea.vmem [#allocation4], %s352
        %v354 = vld [vmem:[%s353] sm:$0xff]
        %v355 = vld [vmem:[%s353 + $0x8] sm:$0xff]
        %v356 = vld [vmem:[%s353 + $0x10] sm:$0xff]
        %v357 = vld [vmem:[%s353 + $0x18] sm:$0xff]
        %v358 = vld [vmem:[%s353 + $0x20] sm:$0xff]
        %v359 = vld [vmem:[%s353 + $0x28] sm:$0xff]
        %v360 = vld [vmem:[%s353 + $0x30] sm:$0xff]
        %v361 = vld [vmem:[%s353 + $0x38] sm:$0xff]
        %s362 = scalar_lea.vmem [#allocation5], %s351
        %v363 = vld [vmem:[%s362] sm:$0x1]
        %s364 = scalar_select %p349, %s350, 0
        %s365 = sadd.s32 %s351, 1
        %s366 = scalar_select %p349, %s365, %s19
        %s367 = smul.u32 %s364, 64
        %s368 = scalar_lea.vmem [#allocation3], %s367
        %v369 = vld [vmem:[%s368] sm:$0xff]
        %v370 = vld [vmem:[%s368 + $0x8] sm:$0xff]
        %v371 = vld [vmem:[%s368 + $0x10] sm:$0xff]
        %v372 = vld [vmem:[%s368 + $0x18] sm:$0xff]
        %v373 = vld [vmem:[%s368 + $0x20] sm:$0xff]
        %v374 = vld [vmem:[%s368 + $0x28] sm:$0xff]
        %v375 = vld [vmem:[%s368 + $0x30] sm:$0xff]
        %v376 = vld [vmem:[%s368 + $0x38] sm:$0xff]
        %s377 = scalar_select %p349, 1, 0
        %v378 = vstv %s377
        %vm379 = vcmp.eq.s32.totalorder %v378, 1
        %v380 = vsel %vm379, %v369, 0.0
        %v381 = vsel %vm379, %v370, 0.0
        %v382 = vsel %vm379, %v371, 0.0
        %v383 = vsel %vm379, %v372, 0.0
        %v384 = vsel %vm379, %v373, 0.0
        %v385 = vsel %vm379, %v374, 0.0
        %v386 = vsel %vm379, %v375, 0.0
        %v387 = vsel %vm379, %v376, 0.0
        %s388 = smul.u32 %s366, 64
        %s389 = scalar_lea.vmem [#allocation4], %s388
        %v390 = vld [vmem:[%s389] sm:$0xff]
        %v391 = vld [vmem:[%s389 + $0x8] sm:$0xff]
        %v392 = vld [vmem:[%s389 + $0x10] sm:$0xff]
        %v393 = vld [vmem:[%s389 + $0x18] sm:$0xff]
        %v394 = vld [vmem:[%s389 + $0x20] sm:$0xff]
        %v395 = vld [vmem:[%s389 + $0x28] sm:$0xff]
        %v396 = vld [vmem:[%s389 + $0x30] sm:$0xff]
        %v397 = vld [vmem:[%s389 + $0x38] sm:$0xff]
        %v398 = vsel %vm379, %v390, 1.0
        %v399 = vsel %vm379, %v391, 1.0
        %v400 = vsel %vm379, %v392, 1.0
        %v401 = vsel %vm379, %v393, 1.0
        %v402 = vsel %vm379, %v394, 1.0
        %v403 = vsel %vm379, %v395, 1.0
        %v404 = vsel %vm379, %v396, 1.0
        %v405 = vsel %vm379, %v397, 1.0
        %v406 = vld [vmem:[#allocation2] sm:$0xff]
        %v407 = vld [vmem:[#allocation2 + $0x8] sm:$0xff]
        %v408 = vld [vmem:[#allocation2 + $0x10] sm:$0xff]
        %v409 = vld [vmem:[#allocation2 + $0x18] sm:$0xff]
        %v410 = vld [vmem:[#allocation2 + $0x20] sm:$0xff]
        %v411 = vld [vmem:[#allocation2 + $0x28] sm:$0xff]
        %v412 = vld [vmem:[#allocation2 + $0x30] sm:$0xff]
        %v413 = vld [vmem:[#allocation2 + $0x38] sm:$0xff]
        %415 = vset.pattern.permute.xlu0 0
        %416 = vperm.xlu0 %415, %v398
        %v417 = vpop.permute.xlu0 %416
        %420 = vset.pattern.permute.xlu0 0
        %421 = vperm.xlu0 %420, %v399
        %v422 = vpop.permute.xlu0 %421
        %425 = vset.pattern.permute.xlu0 0
        %426 = vperm.xlu0 %425, %v400
        %v427 = vpop.permute.xlu0 %426
        %430 = vset.pattern.permute.xlu0 0
        %431 = vperm.xlu0 %430, %v401
        %v432 = vpop.permute.xlu0 %431
        %435 = vset.pattern.permute.xlu0 0
        %436 = vperm.xlu0 %435, %v402
        %v437 = vpop.permute.xlu0 %436
        %440 = vset.pattern.permute.xlu0 0
        %441 = vperm.xlu0 %440, %v403
        %v442 = vpop.permute.xlu0 %441
        %445 = vset.pattern.permute.xlu0 0
        %446 = vperm.xlu0 %445, %v404
        %v447 = vpop.permute.xlu0 %446
        %450 = vset.pattern.permute.xlu0 0
        %451 = vperm.xlu0 %450, %v405
        %v452 = vpop.permute.xlu0 %451
        %v454 = vmul.f32 %v417, %v406
        %v455 = vmul.f32 %v422, %v407
        %v456 = vmul.f32 %v427, %v408
        %v457 = vmul.f32 %v432, %v409
        %v458 = vmul.f32 %v437, %v410
        %v459 = vmul.f32 %v442, %v411
        %v460 = vmul.f32 %v447, %v412
        %v461 = vmul.f32 %v452, %v413
        %v462 = vadd.f32 %v380, %v454
        %v463 = vadd.f32 %v381, %v455
        %v464 = vadd.f32 %v382, %v456
        %v465 = vadd.f32 %v383, %v457
        %v466 = vadd.f32 %v384, %v458
        %v467 = vadd.f32 %v385, %v459
        %v468 = vadd.f32 %v386, %v460
        %v469 = vadd.f32 %v387, %v461
        %471 = vset.pattern.permute.xlu0 0
        %472 = vperm.xlu0 %471, %v354
        %v473 = vpop.permute.xlu0 %472
        %476 = vset.pattern.permute.xlu0 0
        %477 = vperm.xlu0 %476, %v355
        %v478 = vpop.permute.xlu0 %477
        %481 = vset.pattern.permute.xlu0 0
        %482 = vperm.xlu0 %481, %v356
        %v483 = vpop.permute.xlu0 %482
        %486 = vset.pattern.permute.xlu0 0
        %487 = vperm.xlu0 %486, %v357
        %v488 = vpop.permute.xlu0 %487
        %491 = vset.pattern.permute.xlu0 0
        %492 = vperm.xlu0 %491, %v358
        %v493 = vpop.permute.xlu0 %492
        %496 = vset.pattern.permute.xlu0 0
        %497 = vperm.xlu0 %496, %v359
        %v498 = vpop.permute.xlu0 %497
        %501 = vset.pattern.permute.xlu0 0
        %502 = vperm.xlu0 %501, %v360
        %v503 = vpop.permute.xlu0 %502
        %506 = vset.pattern.permute.xlu0 0
        %507 = vperm.xlu0 %506, %v361
        %v508 = vpop.permute.xlu0 %507
        %v510 = vmul.f32 %v473, %v462
        %v511 = vmul.f32 %v478, %v463
        %v512 = vmul.f32 %v483, %v464
        %v513 = vmul.f32 %v488, %v465
        %v514 = vmul.f32 %v493, %v466
        %v515 = vmul.f32 %v498, %v467
        %v516 = vmul.f32 %v503, %v468
        %v517 = vmul.f32 %v508, %v469
        %v518 = vld [vmem:[%s0] sm:$0xff]
        %v519 = vld [vmem:[%s0 + $0x8] sm:$0xff]
        %v520 = vld [vmem:[%s0 + $0x10] sm:$0xff]
        %v521 = vld [vmem:[%s0 + $0x18] sm:$0xff]
        %v522 = vld [vmem:[%s0 + $0x20] sm:$0xff]
        %v523 = vld [vmem:[%s0 + $0x28] sm:$0xff]
        %v524 = vld [vmem:[%s0 + $0x30] sm:$0xff]
        %v525 = vld [vmem:[%s0 + $0x38] sm:$0xff]
        %v526 = vld [vmem:[%s224] sm:$0xff]
        %v527 = vld [vmem:[%s224 + $0x8] sm:$0xff]
        %v528 = vld [vmem:[%s224 + $0x10] sm:$0xff]
        %v529 = vld [vmem:[%s224 + $0x18] sm:$0xff]
        %v530 = vld [vmem:[%s224 + $0x20] sm:$0xff]
        %v531 = vld [vmem:[%s224 + $0x28] sm:$0xff]
        %v532 = vld [vmem:[%s224 + $0x30] sm:$0xff]
        %v533 = vld [vmem:[%s224 + $0x38] sm:$0xff]
        %v534 = vld [vmem:[%s224 + $0x40] sm:$0xff]
        %v535 = vld [vmem:[%s224 + $0x48] sm:$0xff]
        %v536 = vld [vmem:[%s224 + $0x50] sm:$0xff]
        %v537 = vld [vmem:[%s224 + $0x58] sm:$0xff]
        %v538 = vld [vmem:[%s224 + $0x60] sm:$0xff]
        %v539 = vld [vmem:[%s224 + $0x68] sm:$0xff]
        %v540 = vld [vmem:[%s224 + $0x70] sm:$0xff]
        %v541 = vld [vmem:[%s224 + $0x78] sm:$0xff]
        %v542 = vld [vmem:[%s254] sm:$0x1]
        %v544 = vlaneseq
        %v545 = vshrl.u32 %v544, 7
        %v546 = vsub.s32 0, %v545
        %v547 = vrot.slane %v363, %v546
        %v549 = vmul.f32 %v518, %v547
        %v550 = vmul.f32 %v519, %v547
        %v551 = vmul.f32 %v520, %v547
        %v552 = vmul.f32 %v521, %v547
        %v553 = vmul.f32 %v522, %v547
        %v554 = vmul.f32 %v523, %v547
        %v555 = vmul.f32 %v524, %v547
        %v556 = vmul.f32 %v525, %v547
        %vm557 = vcmask 523264
        %v558 = vsel %vm557, %v549, 0.0
        %559 = vadd.xlane.f32.xlu0 %v558
        %v560 = vpop.xlane.xlu0 %559
        %v561 = vsel %vm557, %v550, 0.0
        %562 = vadd.xlane.f32.xlu0 %v561
        %v563 = vpop.xlane.xlu0 %562
        %v564 = vsel %vm557, %v551, 0.0
        %565 = vadd.xlane.f32.xlu0 %v564
        %v566 = vpop.xlane.xlu0 %565
        %v567 = vsel %vm557, %v552, 0.0
        %568 = vadd.xlane.f32.xlu0 %v567
        %v569 = vpop.xlane.xlu0 %568
        %v570 = vsel %vm557, %v553, 0.0
        %571 = vadd.xlane.f32.xlu0 %v570
        %v572 = vpop.xlane.xlu0 %571
        %v573 = vsel %vm557, %v554, 0.0
        %574 = vadd.xlane.f32.xlu0 %v573
        %v575 = vpop.xlane.xlu0 %574
        %v576 = vsel %vm557, %v555, 0.0
        %577 = vadd.xlane.f32.xlu0 %v576
        %v578 = vpop.xlane.xlu0 %577
        %v579 = vsel %vm557, %v556, 0.0
        %580 = vadd.xlane.f32.xlu0 %v579
        %v581 = vpop.xlane.xlu0 %580
        %v582 = vmul.f32 %v354, %v560
        %v583 = vmul.f32 %v355, %v563
        %v584 = vmul.f32 %v356, %v566
        %v585 = vmul.f32 %v357, %v569
        %v586 = vmul.f32 %v358, %v572
        %v587 = vmul.f32 %v359, %v575
        %v588 = vmul.f32 %v360, %v578
        %v589 = vmul.f32 %v361, %v581
        %v590 = vadd.f32 %v582, 2.0
        %v591 = vadd.f32 %v583, 2.0
        %v592 = vadd.f32 %v584, 2.0
        %v593 = vadd.f32 %v585, 2.0
        %v594 = vadd.f32 %v586, 2.0
        %v595 = vadd.f32 %v587, 2.0
        %v596 = vadd.f32 %v588, 2.0
        %v597 = vadd.f32 %v589, 2.0
        %v598 = vrsqrt.pop %v590
        %v599 = vrsqrt.pop %v591
        %v600 = vrsqrt.pop %v592
        %v601 = vrsqrt.pop %v593
        %v602 = vrsqrt.pop %v594
        %v603 = vrsqrt.pop %v595
        %v604 = vrsqrt.pop %v596
        %v605 = vrsqrt.pop %v597
        %606 = vmatprep.subr.mxu0 0.0
        %607 = vmatpush1.msra.mxu0 %v526
        %608 = vmatprep.subr.mxu0 0.0
        %609 = vmatpush1.msra.mxu0 %v527
        %610 = vmatprep.subr.mxu0 0.0
        %611 = vmatpush1.msra.mxu0 %v528
        %612 = vmatprep.subr.mxu0 0.0
        %613 = vmatpush1.msra.mxu0 %v529
        %614 = vmatprep.subr.mxu0 0.0
        %615 = vmatpush1.msra.mxu0 %v530
        %616 = vmatprep.subr.mxu0 0.0
        %617 = vmatpush1.msra.mxu0 %v531
        %618 = vmatprep.subr.mxu0 0.0
        %619 = vmatpush1.msra.mxu0 %v532
        %620 = vmatprep.subr.mxu0 0.0
        %621 = vmatpush1.msra.mxu0 %v533
        %622 = vmatprep.subr.mxu0 0.0
        %623 = vmatpush1.msra.mxu0 %v534
        %624 = vmatprep.subr.mxu0 0.0
        %625 = vmatpush1.msra.mxu0 %v535
        %626 = vmatprep.subr.mxu0 0.0
        %627 = vmatpush1.msra.mxu0 %v536
        %628 = vmatprep.subr.mxu0 0.0
        %629 = vmatpush1.msra.mxu0 %v537
        %630 = vmatprep.subr.mxu0 0.0
        %631 = vmatpush1.msra.mxu0 %v538
        %632 = vmatprep.subr.mxu0 0.0
        %633 = vmatpush1.msra.mxu0 %v539
        %634 = vmatprep.subr.mxu0 0.0
        %635 = vmatpush1.msra.mxu0 %v540
        %636 = vmatprep.subr.mxu0 0.0
        %637 = vmatpush1.msra.mxu0 %v541
        %638 = vmatprep.subr.mxu0 0.0
        %639 = vmatpush1.msra.mxu0 0.0
        %640 = vmatprep.subr.mxu0 0.0
        %641 = vmatpush1.msra.mxu0 0.0
        %642 = vmatprep.subr.mxu0 0.0
        %643 = vmatpush1.msra.mxu0 0.0
        %644 = vmatprep.subr.mxu0 0.0
        %645 = vmatpush1.msra.mxu0 0.0
        %646 = vmatprep.subr.mxu0 0.0
        %647 = vmatpush1.msra.mxu0 0.0
        %648 = vmatprep.subr.mxu0 0.0
        %649 = vmatpush1.msra.mxu0 0.0
        %650 = vmatprep.subr.mxu0 0.0
        %651 = vmatpush1.msra.mxu0 0.0
        %652 = vmatprep.subr.mxu0 0.0
        %653 = vmatpush1.msra.mxu0 0.0
        %654 = vmatprep.subr.mxu0 0.0
        %655 = vmatpush1.msra.mxu0 0.0
        %656 = vmatprep.subr.mxu0 0.0
        %657 = vmatpush1.msra.mxu0 0.0
        %658 = vmatprep.subr.mxu0 0.0
        %659 = vmatpush1.msra.mxu0 0.0
        %660 = vmatprep.subr.mxu0 0.0
        %661 = vmatpush1.msra.mxu0 0.0
        %662 = vmatprep.subr.mxu0 0.0
        %663 = vmatpush1.msra.mxu0 0.0
        %664 = vmatprep.subr.mxu0 0.0
        %665 = vmatpush1.msra.mxu0 0.0
        %666 = vmatprep.subr.mxu0 0.0
        %667 = vmatpush1.msra.mxu0 0.0
        %668 = vmatprep.subr.mxu0 0.0
        %669 = vmatpush1.msra.mxu0 0.0
        %670 = vmatprep.mubr.f32.mxu0 0.0
        %671 = vmatmul.mubr.f32.gmra.mrb[0].mxu0 %v510
        %v672 = vpop.f32.mrb[0].mxu0
        %v673 = vadd.f32 0.0, %v672
        %v674 = vpop.f32.mrb[0].mxu0
        %675 = vmatprep.mubr.f32.mxu0 0.0
        %676 = vmatmul.mubr.f32.gmra.mrb[0].mxu0 %v511
        %v677 = vpop.f32.mrb[0].mxu0
        %v678 = vadd.f32 0.0, %v677
        %v679 = vpop.f32.mrb[0].mxu0
        %680 = vmatprep.mubr.f32.mxu0 0.0
        %681 = vmatmul.mubr.f32.gmra.mrb[0].mxu0 %v512
        %v682 = vpop.f32.mrb[0].mxu0
        %v683 = vadd.f32 0.0, %v682
        %v684 = vpop.f32.mrb[0].mxu0
        %685 = vmatprep.mubr.f32.mxu0 0.0
        %686 = vmatmul.mubr.f32.gmra.mrb[0].mxu0 %v513
        %v687 = vpop.f32.mrb[0].mxu0
        %v688 = vadd.f32 0.0, %v687
        %v689 = vpop.f32.mrb[0].mxu0
        %690 = vmatprep.mubr.f32.mxu0 0.0
        %691 = vmatmul.mubr.f32.gmra.mrb[0].mxu0 %v514
        %v692 = vpop.f32.mrb[0].mxu0
        %v693 = vadd.f32 0.0, %v692
        %v694 = vpop.f32.mrb[0].mxu0
        %695 = vmatprep.mubr.f32.mxu0 0.0
        %696 = vmatmul.mubr.f32.gmra.mrb[0].mxu0 %v515
        %v697 = vpop.f32.mrb[0].mxu0
        %v698 = vadd.f32 0.0, %v697
        %v699 = vpop.f32.mrb[0].mxu0
        %700 = vmatprep.mubr.f32.mxu0 0.0
        %701 = vmatmul.mubr.f32.gmra.mrb[0].mxu0 %v516
        %v702 = vpop.f32.mrb[0].mxu0
        %v703 = vadd.f32 0.0, %v702
        %v704 = vpop.f32.mrb[0].mxu0
        %705 = vmatprep.mubr.f32.mxu0 0.0
        %706 = vmatmul.mubr.f32.gmra.mrb[0].mxu0 %v517
        %v707 = vpop.f32.mrb[0].mxu0
        %v708 = vadd.f32 0.0, %v707
        %v709 = vpop.f32.mrb[0].mxu0
        %710 = vdwg.mxu0
        %v711 = vmul.f32 %v354, %v598
        %v712 = vmul.f32 %v355, %v599
        %v713 = vmul.f32 %v356, %v600
        %v714 = vmul.f32 %v357, %v601
        %v715 = vmul.f32 %v358, %v602
        %v716 = vmul.f32 %v359, %v603
        %v717 = vmul.f32 %v360, %v604
        %v718 = vmul.f32 %v361, %v605
        %720 = vset.pattern.permute.xlu0 0
        %721 = vperm.xlu0 %720, %v711
        %v722 = vpop.permute.xlu0 %721
        %725 = vset.pattern.permute.xlu0 0
        %726 = vperm.xlu0 %725, %v712
        %v727 = vpop.permute.xlu0 %726
        %730 = vset.pattern.permute.xlu0 0
        %731 = vperm.xlu0 %730, %v713
        %v732 = vpop.permute.xlu0 %731
        %735 = vset.pattern.permute.xlu0 0
        %736 = vperm.xlu0 %735, %v714
        %v737 = vpop.permute.xlu0 %736
        %740 = vset.pattern.permute.xlu0 0
        %741 = vperm.xlu0 %740, %v715
        %v742 = vpop.permute.xlu0 %741
        %745 = vset.pattern.permute.xlu0 0
        %746 = vperm.xlu0 %745, %v716
        %v747 = vpop.permute.xlu0 %746
        %750 = vset.pattern.permute.xlu0 0
        %751 = vperm.xlu0 %750, %v717
        %v752 = vpop.permute.xlu0 %751
        %755 = vset.pattern.permute.xlu0 0
        %756 = vperm.xlu0 %755, %v718
        %v757 = vpop.permute.xlu0 %756
        %v759 = vmul.f32 %v722, %v673
        %v760 = vmul.f32 %v727, %v678
        %v761 = vmul.f32 %v732, %v683
        %v762 = vmul.f32 %v737, %v688
        %v763 = vmul.f32 %v742, %v693
        %v764 = vmul.f32 %v747, %v698
        %v765 = vmul.f32 %v752, %v703
        %v766 = vmul.f32 %v757, %v708
        %v768 = vsel %vm557, %v518, 0
        %v771 = vsel %vm557, %v519, 0
        %v774 = vsel %vm557, %v520, 0
        %v777 = vsel %vm557, %v521, 0
        %v780 = vsel %vm557, %v522, 0
        %v783 = vsel %vm557, %v523, 0
        %v786 = vsel %vm557, %v524, 0
        %v789 = vsel %vm557, %v525, 0
        %791 = vmatprep.subr.mxu0 0.0
        %792 = vmatpush1.msra.mxu0 %v759
        %793 = vmatprep.subr.mxu0 0.0
        %794 = vmatpush1.msra.mxu0 %v760
        %795 = vmatprep.subr.mxu0 0.0
        %796 = vmatpush1.msra.mxu0 %v761
        %797 = vmatprep.subr.mxu0 0.0
        %798 = vmatpush1.msra.mxu0 %v762
        %799 = vmatprep.subr.mxu0 0.0
        %800 = vmatpush1.msra.mxu0 %v763
        %801 = vmatprep.subr.mxu0 0.0
        %802 = vmatpush1.msra.mxu0 %v764
        %803 = vmatprep.subr.mxu0 0.0
        %804 = vmatpush1.msra.mxu0 %v765
        %805 = vmatprep.subr.mxu0 0.0
        %806 = vmatpush1.msra.mxu0 %v766
        %807 = vmatprep.subr.mxu0 0.0
        %808 = vmatpush1.msra.mxu0 0.0
        %809 = vmatprep.subr.mxu0 0.0
        %810 = vmatpush1.msra.mxu0 0.0
        %811 = vmatprep.subr.mxu0 0.0
        %812 = vmatpush1.msra.mxu0 0.0
        %813 = vmatprep.subr.mxu0 0.0
        %814 = vmatpush1.msra.mxu0 0.0
        %815 = vmatprep.subr.mxu0 0.0
        %816 = vmatpush1.msra.mxu0 0.0
        %817 = vmatprep.subr.mxu0 0.0
        %818 = vmatpush1.msra.mxu0 0.0
        %819 = vmatprep.subr.mxu0 0.0
        %820 = vmatpush1.msra.mxu0 0.0
        %821 = vmatprep.subr.mxu0 0.0
        %822 = vmatpush1.msra.mxu0 0.0
        %823 = vmatprep.subr.mxu0 0.0
        %824 = vmatpush1.msra.mxu0 0.0
        %825 = vmatprep.subr.mxu0 0.0
        %826 = vmatpush1.msra.mxu0 0.0
        %827 = vmatprep.subr.mxu0 0.0
        %828 = vmatpush1.msra.mxu0 0.0
        %829 = vmatprep.subr.mxu0 0.0
        %830 = vmatpush1.msra.mxu0 0.0
        %831 = vmatprep.subr.mxu0 0.0
        %832 = vmatpush1.msra.mxu0 0.0
        %833 = vmatprep.subr.mxu0 0.0
        %834 = vmatpush1.msra.mxu0 0.0
        %835 = vmatprep.subr.mxu0 0.0
        %836 = vmatpush1.msra.mxu0 0.0
        %837 = vmatprep.subr.mxu0 0.0
        %838 = vmatpush1.msra.mxu0 0.0
        %839 = vmatprep.subr.mxu0 0.0
        %840 = vmatpush1.msra.mxu0 0.0
        %841 = vmatprep.subr.mxu0 0.0
        %842 = vmatpush1.msra.mxu0 0.0
        %843 = vmatprep.subr.mxu0 0.0
        %844 = vmatpush1.msra.mxu0 0.0
        %845 = vmatprep.subr.mxu0 0.0
        %846 = vmatpush1.msra.mxu0 0.0
        %847 = vmatprep.subr.mxu0 0.0
        %848 = vmatpush1.msra.mxu0 0.0
        %849 = vmatprep.subr.mxu0 0.0
        %850 = vmatpush1.msra.mxu0 0.0
        %851 = vmatprep.subr.mxu0 0.0
        %852 = vmatpush1.msra.mxu0 0.0
        %853 = vmatprep.subr.mxu0 0.0
        %854 = vmatpush1.msra.mxu0 0.0
        %855 = vmatprep.mubr.f32.mxu0 0.0
        %856 = vmatmul.mubr.f32.gmra.mrb[0].mxu0 %v768
        %v857 = vpop.f32.mrb[0].mxu0
        %v858 = vadd.f32 0.0, %v857
        %v859 = vpop.f32.mrb[0].mxu0
        %860 = vmatprep.mubr.f32.mxu0 0.0
        %861 = vmatmul.mubr.f32.gmra.mrb[0].mxu0 %v771
        %v862 = vpop.f32.mrb[0].mxu0
        %v863 = vadd.f32 0.0, %v862
        %v864 = vpop.f32.mrb[0].mxu0
        %865 = vmatprep.mubr.f32.mxu0 0.0
        %866 = vmatmul.mubr.f32.gmra.mrb[0].mxu0 %v774
        %v867 = vpop.f32.mrb[0].mxu0
        %v868 = vadd.f32 0.0, %v867
        %v869 = vpop.f32.mrb[0].mxu0
        %870 = vmatprep.mubr.f32.mxu0 0.0
        %871 = vmatmul.mubr.f32.gmra.mrb[0].mxu0 %v777
        %v872 = vpop.f32.mrb[0].mxu0
        %v873 = vadd.f32 0.0, %v872
        %v874 = vpop.f32.mrb[0].mxu0
        %875 = vmatprep.mubr.f32.mxu0 0.0
        %876 = vmatmul.mubr.f32.gmra.mrb[0].mxu0 %v780
        %v877 = vpop.f32.mrb[0].mxu0
        %v878 = vadd.f32 0.0, %v877
        %v879 = vpop.f32.mrb[0].mxu0
        %880 = vmatprep.mubr.f32.mxu0 0.0
        %881 = vmatmul.mubr.f32.gmra.mrb[0].mxu0 %v783
        %v882 = vpop.f32.mrb[0].mxu0
        %v883 = vadd.f32 0.0, %v882
        %v884 = vpop.f32.mrb[0].mxu0
        %885 = vmatprep.mubr.f32.mxu0 0.0
        %886 = vmatmul.mubr.f32.gmra.mrb[0].mxu0 %v786
        %v887 = vpop.f32.mrb[0].mxu0
        %v888 = vadd.f32 0.0, %v887
        %v889 = vpop.f32.mrb[0].mxu0
        %890 = vmatprep.mubr.f32.mxu0 0.0
        %891 = vmatmul.mubr.f32.gmra.mrb[0].mxu0 %v789
        %v892 = vpop.f32.mrb[0].mxu0
        %v893 = vadd.f32 0.0, %v892
        %v894 = vpop.f32.mrb[0].mxu0
        %895 = vdwg.mxu0
        %v896 = vmul.f32 %v722, %v858
        %v897 = vmul.f32 %v727, %v863
        %v898 = vmul.f32 %v732, %v868
        %v899 = vmul.f32 %v737, %v873
        %v900 = vmul.f32 %v742, %v878
        %v901 = vmul.f32 %v747, %v883
        %v902 = vmul.f32 %v752, %v888
        %v903 = vmul.f32 %v757, %v893
        %v904 = vmul.f32 %v598, 2.0
        %v905 = vmul.f32 %v599, 2.0
        %v906 = vmul.f32 %v600, 2.0
        %v907 = vmul.f32 %v601, 2.0
        %v908 = vmul.f32 %v602, 2.0
        %v909 = vmul.f32 %v603, 2.0
        %v910 = vmul.f32 %v604, 2.0
        %v911 = vmul.f32 %v605, 2.0
        %v912 = vmul.f32 %v904, %v598
        %v913 = vmul.f32 %v905, %v599
        %v914 = vmul.f32 %v906, %v600
        %v915 = vmul.f32 %v907, %v601
        %v916 = vmul.f32 %v908, %v602
        %v917 = vmul.f32 %v909, %v603
        %v918 = vmul.f32 %v910, %v604
        %v919 = vmul.f32 %v911, %v605
        %921 = vset.pattern.permute.xlu0 0
        %922 = vperm.xlu0 %921, %v912
        %v923 = vpop.permute.xlu0 %922
        %926 = vset.pattern.permute.xlu0 0
        %927 = vperm.xlu0 %926, %v913
        %v928 = vpop.permute.xlu0 %927
        %931 = vset.pattern.permute.xlu0 0
        %932 = vperm.xlu0 %931, %v914
        %v933 = vpop.permute.xlu0 %932
        %936 = vset.pattern.permute.xlu0 0
        %937 = vperm.xlu0 %936, %v915
        %v938 = vpop.permute.xlu0 %937
        %941 = vset.pattern.permute.xlu0 0
        %942 = vperm.xlu0 %941, %v916
        %v943 = vpop.permute.xlu0 %942
        %946 = vset.pattern.permute.xlu0 0
        %947 = vperm.xlu0 %946, %v917
        %v948 = vpop.permute.xlu0 %947
        %951 = vset.pattern.permute.xlu0 0
        %952 = vperm.xlu0 %951, %v918
        %v953 = vpop.permute.xlu0 %952
        %956 = vset.pattern.permute.xlu0 0
        %957 = vperm.xlu0 %956, %v919
        %v958 = vpop.permute.xlu0 %957
        %v960 = vmul.f32 %v923, %v673
        %v961 = vmul.f32 %v928, %v678
        %v962 = vmul.f32 %v933, %v683
        %v963 = vmul.f32 %v938, %v688
        %v964 = vmul.f32 %v943, %v693
        %v965 = vmul.f32 %v948, %v698
        %v966 = vmul.f32 %v953, %v703
        %v967 = vmul.f32 %v958, %v708
        %v968 = vadd.f32 %v896, %v960
        %v969 = vadd.f32 %v897, %v961
        %v970 = vadd.f32 %v898, %v962
        %v971 = vadd.f32 %v899, %v963
        %v972 = vadd.f32 %v900, %v964
        %v973 = vadd.f32 %v901, %v965
        %v974 = vadd.f32 %v902, %v966
        %v975 = vadd.f32 %v903, %v967
        %v977 = vlaneseq
        %v978 = vshrl.u32 %v977, 7
        %v979 = vsub.s32 0, %v978
        %v980 = vrot.slane %v542, %v979
        %v982 = vadd.f32 %v968, %v980
        %v983 = vadd.f32 %v969, %v980
        %v984 = vadd.f32 %v970, %v980
        %v985 = vadd.f32 %v971, %v980
        %v986 = vadd.f32 %v972, %v980
        %v987 = vadd.f32 %v973, %v980
        %v988 = vadd.f32 %v974, %v980
        %v989 = vadd.f32 %v975, %v980
        %v990 = vmax.f32 %v982, 0.0
        %v991 = vmax.f32 %v983, 0.0
        %v992 = vmax.f32 %v984, 0.0
        %v993 = vmax.f32 %v985, 0.0
        %v994 = vmax.f32 %v986, 0.0
        %v995 = vmax.f32 %v987, 0.0
        %v996 = vmax.f32 %v988, 0.0
        %v997 = vmax.f32 %v989, 0.0
        // Predicated region
        $region49: #{graph_unet_forward.1} parent=39 // pred_check
          %p998 = pneg %p258
        $region50: #{graph_unet_forward.1} parent=39 // pred_check_branch
          %1000 = sbr.rel (%p998) target = $region52
        $region51: #{graph_unet_forward.1} parent=39 // pred_region
          %1001 = vst [vmem:[#allocation3] sm:$0xff] %v990
          %1002 = vst [vmem:[#allocation3 + $0x8] sm:$0xff] %v991
          %1003 = vst [vmem:[#allocation3 + $0x10] sm:$0xff] %v992
          %1004 = vst [vmem:[#allocation3 + $0x18] sm:$0xff] %v993
          %1005 = vst [vmem:[#allocation3 + $0x20] sm:$0xff] %v994
          %1006 = vst [vmem:[#allocation3 + $0x28] sm:$0xff] %v995
          %1007 = vst [vmem:[#allocation3 + $0x30] sm:$0xff] %v996
          %1008 = vst [vmem:[#allocation3 + $0x38] sm:$0xff] %v997
          %v1009 = vld [vmem:[%s257] sm:$0x1]
          %v1011 = vlaneseq
          %v1012 = vshrl.u32 %v1011, 7
          %v1013 = vsub.s32 0, %v1012
          %v1014 = vrot.slane %v1009, %v1013
          %v1016 = vmul.f32 %v990, %v1014
          %v1017 = vmul.f32 %v991, %v1014
          %v1018 = vmul.f32 %v992, %v1014
          %v1019 = vmul.f32 %v993, %v1014
          %v1020 = vmul.f32 %v994, %v1014
          %v1021 = vmul.f32 %v995, %v1014
          %v1022 = vmul.f32 %v996, %v1014
          %v1023 = vmul.f32 %v997, %v1014
          %1024 = vadd.xlane.f32.xlu0 %v1016
          %v1025 = vpop.xlane.xlu0 %1024
          %1026 = vadd.xlane.f32.xlu0 %v1017
          %v1027 = vpop.xlane.xlu0 %1026
          %1028 = vadd.xlane.f32.xlu0 %v1018
          %v1029 = vpop.xlane.xlu0 %1028
          %1030 = vadd.xlane.f32.xlu0 %v1019
          %v1031 = vpop.xlane.xlu0 %1030
          %1032 = vadd.xlane.f32.xlu0 %v1020
          %v1033 = vpop.xlane.xlu0 %1032
          %1034 = vadd.xlane.f32.xlu0 %v1021
          %v1035 = vpop.xlane.xlu0 %1034
          %1036 = vadd.xlane.f32.xlu0 %v1022
          %v1037 = vpop.xlane.xlu0 %1036
          %1038 = vadd.xlane.f32.xlu0 %v1023
          %v1039 = vpop.xlane.xlu0 %1038
          %v1040 = vtanh.pop %v1025
          %v1041 = vtanh.pop %v1027
          %v1042 = vtanh.pop %v1029
          %v1043 = vtanh.pop %v1031
          %v1044 = vtanh.pop %v1033
          %v1045 = vtanh.pop %v1035
          %v1046 = vtanh.pop %v1037
          %v1047 = vtanh.pop %v1039
          %v1048 = vlaneseq
          %v1049 = vshrl.u32 %v1048, 7
          %v1050 = vadd.s32 %v1049, 8
          %v1051 = vadd.s32 %v1049, 16
          %v1052 = vadd.s32 %v1049, 24
          %v1053 = vadd.s32 %v1049, 32
          %v1054 = vadd.s32 %v1049, 40
          %v1055 = vadd.s32 %v1049, 48
          %v1056 = vadd.s32 %v1049, 56
          %v1057 = vlaneseq
          %v1058 = vand.u32 %v1057, 127
          %vm1059 = vcmp.eq.s32.totalorder %v1049, %v1058
          %vm1060 = vcmp.eq.s32.totalorder %v1050, %v1058
          %vm1061 = vcmp.eq.s32.totalorder %v1051, %v1058
          %vm1062 = vcmp.eq.s32.totalorder %v1052, %v1058
          %vm1063 = vcmp.eq.s32.totalorder %v1053, %v1058
          %vm1064 = vcmp.eq.s32.totalorder %v1054, %v1058
          %vm1065 = vcmp.eq.s32.totalorder %v1055, %v1058
          %vm1066 = vcmp.eq.s32.totalorder %v1056, %v1058
          %v1067 = vsel %vm1059, %v1040, 0.0
          %v1068 = vsel %vm1060, %v1041, 0.0
          %v1069 = vsel %vm1061, %v1042, 0.0
          %v1070 = vsel %vm1062, %v1043, 0.0
          %v1071 = vsel %vm1063, %v1044, 0.0
          %v1072 = vsel %vm1064, %v1045, 0.0
          %v1073 = vsel %vm1065, %v1046, 0.0
          %v1074 = vsel %vm1066, %v1047, 0.0
          %v1075 = vsel %vm557, %v1067, 0.0
          %v1076 = vsel %vm557, %v1068, 0.0
          %v1077 = vadd.f32 %v1075, %v1076
          %v1078 = vsel %vm557, %v1069, 0.0
          %v1079 = vadd.f32 %v1077, %v1078
          %v1080 = vsel %vm557, %v1070, 0.0
          %v1081 = vadd.f32 %v1079, %v1080
          %v1082 = vsel %vm557, %v1071, 0.0
          %v1083 = vadd.f32 %v1081, %v1082
          %v1084 = vsel %vm557, %v1072, 0.0
          %v1085 = vadd.f32 %v1083, %v1084
          %v1086 = vsel %vm557, %v1073, 0.0
          %v1087 = vadd.f32 %v1085, %v1086
          %v1088 = vsel %vm557, %v1074, 0.0
          %v1089 = vadd.f32 %v1087, %v1088
          %v1090 = vrot.slane %v1089, 4
          %v1091 = vadd.f32 %v1089, %v1090
          %v1092 = vrot.slane %v1091, 2
          %v1093 = vadd.f32 %v1091, %v1092
          %v1094 = vrot.slane %v1093, 1
          %v1095 = vadd.f32 %v1093, %v1094
          %vm1096 = vcmp.gt.f32.partialorder %v1095, %v1040
          %vm1097 = vcmp.gt.f32.partialorder %v1095, %v1041
          %vm1098 = vcmp.gt.f32.partialorder %v1095, %v1042
          %vm1099 = vcmp.gt.f32.partialorder %v1095, %v1043
          %vm1100 = vcmp.gt.f32.partialorder %v1095, %v1044
          %vm1101 = vcmp.gt.f32.partialorder %v1095, %v1045
          %vm1102 = vcmp.gt.f32.partialorder %v1095, %v1046
          %vm1103 = vcmp.gt.f32.partialorder %v1095, %v1047
          %vm1104 = vcmp.eq.f32.partialorder %v1095, %v1040
          %vm1105 = vcmp.eq.f32.partialorder %v1095, %v1041
          %vm1106 = vcmp.eq.f32.partialorder %v1095, %v1042
          %vm1107 = vcmp.eq.f32.partialorder %v1095, %v1043
          %vm1108 = vcmp.eq.f32.partialorder %v1095, %v1044
          %vm1109 = vcmp.eq.f32.partialorder %v1095, %v1045
          %vm1110 = vcmp.eq.f32.partialorder %v1095, %v1046
          %vm1111 = vcmp.eq.f32.partialorder %v1095, %v1047
          %vm1112 = vcmp.lt.s32.totalorder %v1058, %v1049
          %vm1113 = vcmp.lt.s32.totalorder %v1058, %v1050
          %vm1114 = vcmp.lt.s32.totalorder %v1058, %v1051
          %vm1115 = vcmp.lt.s32.totalorder %v1058, %v1052
          %vm1116 = vcmp.lt.s32.totalorder %v1058, %v1053
          %vm1117 = vcmp.lt.s32.totalorder %v1058, %v1054
          %vm1118 = vcmp.lt.s32.totalorder %v1058, %v1055
          %vm1119 = vcmp.lt.s32.totalorder %v1058, %v1056
          %vm1120 = vmand %vm1104, %vm1112
          %vm1121 = vmand %vm1105, %vm1113
          %vm1122 = vmand %vm1106, %vm1114
          %vm1123 = vmand %vm1107, %vm1115
          %vm1124 = vmand %vm1108, %vm1116
          %vm1125 = vmand %vm1109, %vm1117
          %vm1126 = vmand %vm1110, %vm1118
          %vm1127 = vmand %vm1111, %vm1119
          %vm1128 = vmor %vm1096, %vm1120
          %vm1129 = vmor %vm1097, %vm1121
          %vm1130 = vmor %vm1098, %vm1122
          %vm1131 = vmor %vm1099, %vm1123
          %vm1132 = vmor %vm1100, %vm1124
          %vm1133 = vmor %vm1101, %vm1125
          %vm1134 = vmor %vm1102, %vm1126
          %vm1135 = vmor %vm1103, %vm1127
          %v1136 = vsel %vm1128, 1.0, 0.0
          %v1137 = vsel %vm1129, 1.0, 0.0
          %v1138 = vsel %vm1130, 1.0, 0.0
          %v1139 = vsel %vm1131, 1.0, 0.0
          %v1140 = vsel %vm1132, 1.0, 0.0
          %v1141 = vsel %vm1133, 1.0, 0.0
          %v1142 = vsel %vm1134, 1.0, 0.0
          %v1143 = vsel %vm1135, 1.0, 0.0
          %v1144 = vmul.f32 %v1136, %v547
          %v1145 = vmul.f32 %v1137, %v547
          %v1146 = vmul.f32 %v1138, %v547
          %v1147 = vmul.f32 %v1139, %v547
          %v1148 = vmul.f32 %v1140, %v547
          %v1149 = vmul.f32 %v1141, %v547
          %v1150 = vmul.f32 %v1142, %v547
          %v1151 = vmul.f32 %v1143, %v547
          %v1152 = vsel %vm557, %v1144, 0.0
          %1153 = vadd.xlane.f32.xlu0 %v1152
          %v1154 = vpop.xlane.xlu0 %1153
          %v1155 = vsel %vm557, %v1145, 0.0
          %1156 = vadd.xlane.f32.xlu0 %v1155
          %v1157 = vpop.xlane.xlu0 %1156
          %v1158 = vsel %vm557, %v1146, 0.0
          %1159 = vadd.xlane.f32.xlu0 %v1158
          %v1160 = vpop.xlane.xlu0 %1159
          %v1161 = vsel %vm557, %v1147, 0.0
          %1162 = vadd.xlane.f32.xlu0 %v1161
          %v1163 = vpop.xlane.xlu0 %1162
          %v1164 = vsel %vm557, %v1148, 0.0
          %1165 = vadd.xlane.f32.xlu0 %v1164
          %v1166 = vpop.xlane.xlu0 %1165
          %v1167 = vsel %vm557, %v1149, 0.0
          %1168 = vadd.xlane.f32.xlu0 %v1167
          %v1169 = vpop.xlane.xlu0 %1168
          %v1170 = vsel %vm557, %v1150, 0.0
          %1171 = vadd.xlane.f32.xlu0 %v1170
          %v1172 = vpop.xlane.xlu0 %1171
          %v1173 = vsel %vm557, %v1151, 0.0
          %1174 = vadd.xlane.f32.xlu0 %v1173
          %v1175 = vpop.xlane.xlu0 %1174
          %vm1176 = vcmp.gt.f32.partialorder %v1040, %v1095
          %vm1177 = vcmp.gt.f32.partialorder %v1041, %v1095
          %vm1178 = vcmp.gt.f32.partialorder %v1042, %v1095
          %vm1179 = vcmp.gt.f32.partialorder %v1043, %v1095
          %vm1180 = vcmp.gt.f32.partialorder %v1044, %v1095
          %vm1181 = vcmp.gt.f32.partialorder %v1045, %v1095
          %vm1182 = vcmp.gt.f32.partialorder %v1046, %v1095
          %vm1183 = vcmp.gt.f32.partialorder %v1047, %v1095
          %vm1184 = vcmp.eq.f32.partialorder %v1040, %v1095
          %vm1185 = vcmp.eq.f32.partialorder %v1041, %v1095
          %vm1186 = vcmp.eq.f32.partialorder %v1042, %v1095
          %vm1187 = vcmp.eq.f32.partialorder %v1043, %v1095
          %vm1188 = vcmp.eq.f32.partialorder %v1044, %v1095
          %vm1189 = vcmp.eq.f32.partialorder %v1045, %v1095
          %vm1190 = vcmp.eq.f32.partialorder %v1046, %v1095
          %vm1191 = vcmp.eq.f32.partialorder %v1047, %v1095
          %vm1192 = vcmp.lt.s32.totalorder %v1049, %v1058
          %vm1193 = vcmp.lt.s32.totalorder %v1050, %v1058
          %vm1194 = vcmp.lt.s32.totalorder %v1051, %v1058
          %vm1195 = vcmp.lt.s32.totalorder %v1052, %v1058
          %vm1196 = vcmp.lt.s32.totalorder %v1053, %v1058
          %vm1197 = vcmp.lt.s32.totalorder %v1054, %v1058
          %vm1198 = vcmp.lt.s32.totalorder %v1055, %v1058
          %vm1199 = vcmp.lt.s32.totalorder %v1056, %v1058
          %vm1200 = vmand %vm1184, %vm1192
          %vm1201 = vmand %vm1185, %vm1193
          %vm1202 = vmand %vm1186, %vm1194
          %vm1203 = vmand %vm1187, %vm1195
          %vm1204 = vmand %vm1188, %vm1196
          %vm1205 = vmand %vm1189, %vm1197
          %vm1206 = vmand %vm1190, %vm1198
          %vm1207 = vmand %vm1191, %vm1199
          %vm1208 = vmor %vm1176, %vm1200
          %vm1209 = vmor %vm1177, %vm1201
          %vm1210 = vmor %vm1178, %vm1202
          %vm1211 = vmor %vm1179, %vm1203
          %vm1212 = vmor %vm1180, %vm1204
          %vm1213 = vmor %vm1181, %vm1205
          %vm1214 = vmor %vm1182, %vm1206
          %vm1215 = vmor %vm1183, %vm1207
          %v1216 = vsel %vm1208, 1.0, 0.0
          %v1217 = vsel %vm1209, 1.0, 0.0
          %v1218 = vsel %vm1210, 1.0, 0.0
          %v1219 = vsel %vm1211, 1.0, 0.0
          %v1220 = vsel %vm1212, 1.0, 0.0
          %v1221 = vsel %vm1213, 1.0, 0.0
          %v1222 = vsel %vm1214, 1.0, 0.0
          %v1223 = vsel %vm1215, 1.0, 0.0
          %v1224 = vmul.f32 %v1216, %v473
          %v1225 = vmul.f32 %v1217, %v478
          %v1226 = vmul.f32 %v1218, %v483
          %v1227 = vmul.f32 %v1219, %v488
          %v1228 = vmul.f32 %v1220, %v493
          %v1229 = vmul.f32 %v1221, %v498
          %v1230 = vmul.f32 %v1222, %v503
          %v1231 = vmul.f32 %v1223, %v508
          %v1232 = vsel %vm557, %v1224, 0.0
          %v1233 = vsel %vm557, %v1225, 0.0
          %v1234 = vadd.f32 %v1232, %v1233
          %v1235 = vsel %vm557, %v1226, 0.0
          %v1236 = vadd.f32 %v1234, %v1235
          %v1237 = vsel %vm557, %v1227, 0.0
          %v1238 = vadd.f32 %v1236, %v1237
          %v1239 = vsel %vm557, %v1228, 0.0
          %v1240 = vadd.f32 %v1238, %v1239
          %v1241 = vsel %vm557, %v1229, 0.0
          %v1242 = vadd.f32 %v1240, %v1241
          %v1243 = vsel %vm557, %v1230, 0.0
          %v1244 = vadd.f32 %v1242, %v1243
          %v1245 = vsel %vm557, %v1231, 0.0
          %v1246 = vadd.f32 %v1244, %v1245
          %v1247 = vrot.slane %v1246, 4
          %v1248 = vadd.f32 %v1246, %v1247
          %v1249 = vrot.slane %v1248, 2
          %v1250 = vadd.f32 %v1248, %v1249
          %v1251 = vrot.slane %v1250, 1
          %v1252 = vadd.f32 %v1250, %v1251
          %vm1253 = vcmp.lt.f32.partialorder %v1154, 32.0
          %vm1254 = vcmp.lt.f32.partialorder %v1157, 32.0
          %vm1255 = vcmp.lt.f32.partialorder %v1160, 32.0
          %vm1256 = vcmp.lt.f32.partialorder %v1163, 32.0
          %vm1257 = vcmp.lt.f32.partialorder %v1166, 32.0
          %vm1258 = vcmp.lt.f32.partialorder %v1169, 32.0
          %vm1259 = vcmp.lt.f32.partialorder %v1172, 32.0
          %vm1260 = vcmp.lt.f32.partialorder %v1175, 32.0
          %v1261 = vsel %vm1253, 1.0, 0.0
          %v1262 = vsel %vm1254, 1.0, 0.0
          %v1263 = vsel %vm1255, 1.0, 0.0
          %v1264 = vsel %vm1256, 1.0, 0.0
          %v1265 = vsel %vm1257, 1.0, 0.0
          %v1266 = vsel %vm1258, 1.0, 0.0
          %v1267 = vsel %vm1259, 1.0, 0.0
          %v1268 = vsel %vm1260, 1.0, 0.0
          %v1269 = vmul.f32 %v354, %v1261
          %v1270 = vmul.f32 %v355, %v1262
          %v1271 = vmul.f32 %v356, %v1263
          %v1272 = vmul.f32 %v357, %v1264
          %v1273 = vmul.f32 %v358, %v1265
          %v1274 = vmul.f32 %v359, %v1266
          %v1275 = vmul.f32 %v360, %v1267
          %v1276 = vmul.f32 %v361, %v1268
          %vm1277 = vcmp.lt.f32.partialorder %v1252, 32.0
          %v1278 = vsel %vm1277, 1.0, 0.0
          %v1279 = vmul.f32 %v363, %v1278
          %s1280 = scalar_lea.vmem [#allocation4], 64
          %vm1281 = vcmask 7168
          %1282 = vst.msk [vmem:[%s1280] sm:$0xff] %vm1281, %v1269
          %1283 = vst.msk [vmem:[%s1280 + $0x8] sm:$0xff] %vm1281, %v1270
          %1284 = vst.msk [vmem:[%s1280 + $0x10] sm:$0xff] %vm1281, %v1271
          %1285 = vst.msk [vmem:[%s1280 + $0x18] sm:$0xff] %vm1281, %v1272
          %1286 = vst.msk [vmem:[%s1280 + $0x20] sm:$0xff] %vm1281, %v1273
          %1287 = vst.msk [vmem:[%s1280 + $0x28] sm:$0xff] %vm1281, %v1274
          %1288 = vst.msk [vmem:[%s1280 + $0x30] sm:$0xff] %vm1281, %v1275
          %1289 = vst.msk [vmem:[%s1280 + $0x38] sm:$0xff] %vm1281, %v1276
          %s1290 = scalar_lea.vmem [#allocation5], 1
          %vm1291 = vcmask 516096
          %1292 = vst.msk [vmem:[%s1290] sm:$0x1] %vm1291, %v1279
          %v1293 = vmul.f32 %v990, %v1040
          %v1294 = vmul.f32 %v991, %v1041
          %v1295 = vmul.f32 %v992, %v1042
          %v1296 = vmul.f32 %v993, %v1043
          %v1297 = vmul.f32 %v994, %v1044
          %v1298 = vmul.f32 %v995, %v1045
          %v1299 = vmul.f32 %v996, %v1046
          %v1300 = vmul.f32 %v997, %v1047
          %1302 = vset.pattern.permute.xlu0 0
          %1303 = vperm.xlu0 %1302, %v1269
          %v1304 = vpop.permute.xlu0 %1303
          %1307 = vset.pattern.permute.xlu0 0
          %1308 = vperm.xlu0 %1307, %v1270
          %v1309 = vpop.permute.xlu0 %1308
          %1312 = vset.pattern.permute.xlu0 0
          %1313 = vperm.xlu0 %1312, %v1271
          %v1314 = vpop.permute.xlu0 %1313
          %1317 = vset.pattern.permute.xlu0 0
          %1318 = vperm.xlu0 %1317, %v1272
          %v1319 = vpop.permute.xlu0 %1318
          %1322 = vset.pattern.permute.xlu0 0
          %1323 = vperm.xlu0 %1322, %v1273
          %v1324 = vpop.permute.xlu0 %1323
          %1327 = vset.pattern.permute.xlu0 0
          %1328 = vperm.xlu0 %1327, %v1274
          %v1329 = vpop.permute.xlu0 %1328
          %1332 = vset.pattern.permute.xlu0 0
          %1333 = vperm.xlu0 %1332, %v1275
          %v1334 = vpop.permute.xlu0 %1333
          %1337 = vset.pattern.permute.xlu0 0
          %1338 = vperm.xlu0 %1337, %v1276
          %v1339 = vpop.permute.xlu0 %1338
          %v1341 = vmul.f32 %v1304, %v1293
          %v1342 = vmul.f32 %v1309, %v1294
          %v1343 = vmul.f32 %v1314, %v1295
          %v1344 = vmul.f32 %v1319, %v1296
          %v1345 = vmul.f32 %v1324, %v1297
          %v1346 = vmul.f32 %v1329, %v1298
          %v1347 = vmul.f32 %v1334, %v1299
          %v1348 = vmul.f32 %v1339, %v1300
          %1349 = vst [vmem:[#allocation2] sm:$0xff] %v1341
          %1350 = vst [vmem:[#allocation2 + $0x8] sm:$0xff] %v1342
          %1351 = vst [vmem:[#allocation2 + $0x10] sm:$0xff] %v1343
          %1352 = vst [vmem:[#allocation2 + $0x18] sm:$0xff] %v1344
          %1353 = vst [vmem:[#allocation2 + $0x20] sm:$0xff] %v1345
          %1354 = vst [vmem:[#allocation2 + $0x28] sm:$0xff] %v1346
          %1355 = vst [vmem:[#allocation2 + $0x30] sm:$0xff] %v1347
          %1356 = vst [vmem:[#allocation2 + $0x38] sm:$0xff] %v1348
        $region52: #{graph_unet_forward.1} parent=39 // pred_fallthru
          _
        %p1357 = scmp.eq.s32.totalorder %s19, 1
        // Predicated region
        $region53: #{graph_unet_forward.1} parent=39 // pred_check
          %p1358 = pneg %p1357
        $region54: #{graph_unet_forward.1} parent=39 // pred_check_branch
          %1360 = sbr.rel (%p1358) target = $region56
        $region55: #{graph_unet_forward.1} parent=39 // pred_region
          %s1361 = scalar_lea.vmem [#allocation3], 64
          %1362 = vst [vmem:[%s1361] sm:$0xff] %v990
          %1363 = vst [vmem:[%s1361 + $0x8] sm:$0xff] %v991
          %1364 = vst [vmem:[%s1361 + $0x10] sm:$0xff] %v992
          %1365 = vst [vmem:[%s1361 + $0x18] sm:$0xff] %v993
          %1366 = vst [vmem:[%s1361 + $0x20] sm:$0xff] %v994
          %1367 = vst [vmem:[%s1361 + $0x28] sm:$0xff] %v995
          %1368 = vst [vmem:[%s1361 + $0x30] sm:$0xff] %v996
          %1369 = vst [vmem:[%s1361 + $0x38] sm:$0xff] %v997
          %v1370 = vld [vmem:[%s257] sm:$0x1]
          %v1372 = vlaneseq
          %v1373 = vshrl.u32 %v1372, 7
          %v1374 = vsub.s32 0, %v1373
          %v1375 = vrot.slane %v1370, %v1374
          %v1377 = vmul.f32 %v990, %v1375
          %v1378 = vmul.f32 %v991, %v1375
          %v1379 = vmul.f32 %v992, %v1375
          %v1380 = vmul.f32 %v993, %v1375
          %v1381 = vmul.f32 %v994, %v1375
          %v1382 = vmul.f32 %v995, %v1375
          %v1383 = vmul.f32 %v996, %v1375
          %v1384 = vmul.f32 %v997, %v1375
          %1385 = vadd.xlane.f32.xlu0 %v1377
          %v1386 = vpop.xlane.xlu0 %1385
          %1387 = vadd.xlane.f32.xlu0 %v1378
          %v1388 = vpop.xlane.xlu0 %1387
          %1389 = vadd.xlane.f32.xlu0 %v1379
          %v1390 = vpop.xlane.xlu0 %1389
          %1391 = vadd.xlane.f32.xlu0 %v1380
          %v1392 = vpop.xlane.xlu0 %1391
          %1393 = vadd.xlane.f32.xlu0 %v1381
          %v1394 = vpop.xlane.xlu0 %1393
          %1395 = vadd.xlane.f32.xlu0 %v1382
          %v1396 = vpop.xlane.xlu0 %1395
          %1397 = vadd.xlane.f32.xlu0 %v1383
          %v1398 = vpop.xlane.xlu0 %1397
          %1399 = vadd.xlane.f32.xlu0 %v1384
          %v1400 = vpop.xlane.xlu0 %1399
          %v1401 = vtanh.pop %v1386
          %v1402 = vtanh.pop %v1388
          %v1403 = vtanh.pop %v1390
          %v1404 = vtanh.pop %v1392
          %v1405 = vtanh.pop %v1394
          %v1406 = vtanh.pop %v1396
          %v1407 = vtanh.pop %v1398
          %v1408 = vtanh.pop %v1400
          %v1409 = vlaneseq
          %v1410 = vshrl.u32 %v1409, 7
          %v1411 = vadd.s32 %v1410, 8
          %v1412 = vadd.s32 %v1410, 16
          %v1413 = vadd.s32 %v1410, 24
          %v1414 = vadd.s32 %v1410, 32
          %v1415 = vadd.s32 %v1410, 40
          %v1416 = vadd.s32 %v1410, 48
          %v1417 = vadd.s32 %v1410, 56
          %v1418 = vlaneseq
          %v1419 = vand.u32 %v1418, 127
          %vm1420 = vcmp.eq.s32.totalorder %v1410, %v1419
          %vm1421 = vcmp.eq.s32.totalorder %v1411, %v1419
          %vm1422 = vcmp.eq.s32.totalorder %v1412, %v1419
          %vm1423 = vcmp.eq.s32.totalorder %v1413, %v1419
          %vm1424 = vcmp.eq.s32.totalorder %v1414, %v1419
          %vm1425 = vcmp.eq.s32.totalorder %v1415, %v1419
          %vm1426 = vcmp.eq.s32.totalorder %v1416, %v1419
          %vm1427 = vcmp.eq.s32.totalorder %v1417, %v1419
          %v1428 = vsel %vm1420, %v1401, 0.0
          %v1429 = vsel %vm1421, %v1402, 0.0
          %v1430 = vsel %vm1422, %v1403, 0.0
          %v1431 = vsel %vm1423, %v1404, 0.0
          %v1432 = vsel %vm1424, %v1405, 0.0
          %v1433 = vsel %vm1425, %v1406, 0.0
          %v1434 = vsel %vm1426, %v1407, 0.0
          %v1435 = vsel %vm1427, %v1408, 0.0
          %v1436 = vsel %vm557, %v1428, 0.0
          %v1437 = vsel %vm557, %v1429, 0.0
          %v1438 = vadd.f32 %v1436, %v1437
          %v1439 = vsel %vm557, %v1430, 0.0
          %v1440 = vadd.f32 %v1438, %v1439
          %v1441 = vsel %vm557, %v1431, 0.0
          %v1442 = vadd.f32 %v1440, %v1441
          %v1443 = vsel %vm557, %v1432, 0.0
          %v1444 = vadd.f32 %v1442, %v1443
          %v1445 = vsel %vm557, %v1433, 0.0
          %v1446 = vadd.f32 %v1444, %v1445
          %v1447 = vsel %vm557, %v1434, 0.0
          %v1448 = vadd.f32 %v1446, %v1447
          %v1449 = vsel %vm557, %v1435, 0.0
          %v1450 = vadd.f32 %v1448, %v1449
          %v1451 = vrot.slane %v1450, 4
          %v1452 = vadd.f32 %v1450, %v1451
          %v1453 = vrot.slane %v1452, 2
          %v1454 = vadd.f32 %v1452, %v1453
          %v1455 = vrot.slane %v1454, 1
          %v1456 = vadd.f32 %v1454, %v1455
          %vm1457 = vcmp.gt.f32.partialorder %v1456, %v1401
          %vm1458 = vcmp.gt.f32.partialorder %v1456, %v1402
          %vm1459 = vcmp.gt.f32.partialorder %v1456, %v1403
          %vm1460 = vcmp.gt.f32.partialorder %v1456, %v1404
          %vm1461 = vcmp.gt.f32.partialorder %v1456, %v1405
          %vm1462 = vcmp.gt.f32.partialorder %v1456, %v1406
          %vm1463 = vcmp.gt.f32.partialorder %v1456, %v1407
          %vm1464 = vcmp.gt.f32.partialorder %v1456, %v1408
          %vm1465 = vcmp.eq.f32.partialorder %v1456, %v1401
          %vm1466 = vcmp.eq.f32.partialorder %v1456, %v1402
          %vm1467 = vcmp.eq.f32.partialorder %v1456, %v1403
          %vm1468 = vcmp.eq.f32.partialorder %v1456, %v1404
          %vm1469 = vcmp.eq.f32.partialorder %v1456, %v1405
          %vm1470 = vcmp.eq.f32.partialorder %v1456, %v1406
          %vm1471 = vcmp.eq.f32.partialorder %v1456, %v1407
          %vm1472 = vcmp.eq.f32.partialorder %v1456, %v1408
          %vm1473 = vcmp.lt.s32.totalorder %v1419, %v1410
          %vm1474 = vcmp.lt.s32.totalorder %v1419, %v1411
          %vm1475 = vcmp.lt.s32.totalorder %v1419, %v1412
          %vm1476 = vcmp.lt.s32.totalorder %v1419, %v1413
          %vm1477 = vcmp.lt.s32.totalorder %v1419, %v1414
          %vm1478 = vcmp.lt.s32.totalorder %v1419, %v1415
          %vm1479 = vcmp.lt.s32.totalorder %v1419, %v1416
          %vm1480 = vcmp.lt.s32.totalorder %v1419, %v1417
          %vm1481 = vmand %vm1465, %vm1473
          %vm1482 = vmand %vm1466, %vm1474
          %vm1483 = vmand %vm1467, %vm1475
          %vm1484 = vmand %vm1468, %vm1476
          %vm1485 = vmand %vm1469, %vm1477
          %vm1486 = vmand %vm1470, %vm1478
          %vm1487 = vmand %vm1471, %vm1479
          %vm1488 = vmand %vm1472, %vm1480
          %vm1489 = vmor %vm1457, %vm1481
          %vm1490 = vmor %vm1458, %vm1482
          %vm1491 = vmor %vm1459, %vm1483
          %vm1492 = vmor %vm1460, %vm1484
          %vm1493 = vmor %vm1461, %vm1485
          %vm1494 = vmor %vm1462, %vm1486
          %vm1495 = vmor %vm1463, %vm1487
          %vm1496 = vmor %vm1464, %vm1488
          %v1497 = vsel %vm1489, 1.0, 0.0
          %v1498 = vsel %vm1490, 1.0, 0.0
          %v1499 = vsel %vm1491, 1.0, 0.0
          %v1500 = vsel %vm1492, 1.0, 0.0
          %v1501 = vsel %vm1493, 1.0, 0.0
          %v1502 = vsel %vm1494, 1.0, 0.0
          %v1503 = vsel %vm1495, 1.0, 0.0
          %v1504 = vsel %vm1496, 1.0, 0.0
          %v1505 = vmul.f32 %v1497, %v547
          %v1506 = vmul.f32 %v1498, %v547
          %v1507 = vmul.f32 %v1499, %v547
          %v1508 = vmul.f32 %v1500, %v547
          %v1509 = vmul.f32 %v1501, %v547
          %v1510 = vmul.f32 %v1502, %v547
          %v1511 = vmul.f32 %v1503, %v547
          %v1512 = vmul.f32 %v1504, %v547
          %v1513 = vsel %vm557, %v1505, 0.0
          %1514 = vadd.xlane.f32.xlu0 %v1513
          %v1515 = vpop.xlane.xlu0 %1514
          %v1516 = vsel %vm557, %v1506, 0.0
          %1517 = vadd.xlane.f32.xlu0 %v1516
          %v1518 = vpop.xlane.xlu0 %1517
          %v1519 = vsel %vm557, %v1507, 0.0
          %1520 = vadd.xlane.f32.xlu0 %v1519
          %v1521 = vpop.xlane.xlu0 %1520
          %v1522 = vsel %vm557, %v1508, 0.0
          %1523 = vadd.xlane.f32.xlu0 %v1522
          %v1524 = vpop.xlane.xlu0 %1523
          %v1525 = vsel %vm557, %v1509, 0.0
          %1526 = vadd.xlane.f32.xlu0 %v1525
          %v1527 = vpop.xlane.xlu0 %1526
          %v1528 = vsel %vm557, %v1510, 0.0
          %1529 = vadd.xlane.f32.xlu0 %v1528
          %v1530 = vpop.xlane.xlu0 %1529
          %v1531 = vsel %vm557, %v1511, 0.0
          %1532 = vadd.xlane.f32.xlu0 %v1531
          %v1533 = vpop.xlane.xlu0 %1532
          %v1534 = vsel %vm557, %v1512, 0.0
          %1535 = vadd.xlane.f32.xlu0 %v1534
          %v1536 = vpop.xlane.xlu0 %1535
          %vm1537 = vcmp.gt.f32.partialorder %v1401, %v1456
          %vm1538 = vcmp.gt.f32.partialorder %v1402, %v1456
          %vm1539 = vcmp.gt.f32.partialorder %v1403, %v1456
          %vm1540 = vcmp.gt.f32.partialorder %v1404, %v1456
          %vm1541 = vcmp.gt.f32.partialorder %v1405, %v1456
          %vm1542 = vcmp.gt.f32.partialorder %v1406, %v1456
          %vm1543 = vcmp.gt.f32.partialorder %v1407, %v1456
          %vm1544 = vcmp.gt.f32.partialorder %v1408, %v1456
          %vm1545 = vcmp.eq.f32.partialorder %v1401, %v1456
          %vm1546 = vcmp.eq.f32.partialorder %v1402, %v1456
          %vm1547 = vcmp.eq.f32.partialorder %v1403, %v1456
          %vm1548 = vcmp.eq.f32.partialorder %v1404, %v1456
          %vm1549 = vcmp.eq.f32.partialorder %v1405, %v1456
          %vm1550 = vcmp.eq.f32.partialorder %v1406, %v1456
          %vm1551 = vcmp.eq.f32.partialorder %v1407, %v1456
          %vm1552 = vcmp.eq.f32.partialorder %v1408, %v1456
          %vm1553 = vcmp.lt.s32.totalorder %v1410, %v1419
          %vm1554 = vcmp.lt.s32.totalorder %v1411, %v1419
          %vm1555 = vcmp.lt.s32.totalorder %v1412, %v1419
          %vm1556 = vcmp.lt.s32.totalorder %v1413, %v1419
          %vm1557 = vcmp.lt.s32.totalorder %v1414, %v1419
          %vm1558 = vcmp.lt.s32.totalorder %v1415, %v1419
          %vm1559 = vcmp.lt.s32.totalorder %v1416, %v1419
          %vm1560 = vcmp.lt.s32.totalorder %v1417, %v1419
          %vm1561 = vmand %vm1545, %vm1553
          %vm1562 = vmand %vm1546, %vm1554
          %vm1563 = vmand %vm1547, %vm1555
          %vm1564 = vmand %vm1548, %vm1556
          %vm1565 = vmand %vm1549, %vm1557
          %vm1566 = vmand %vm1550, %vm1558
          %vm1567 = vmand %vm1551, %vm1559
          %vm1568 = vmand %vm1552, %vm1560
          %vm1569 = vmor %vm1537, %vm1561
          %vm1570 = vmor %vm1538, %vm1562
          %vm1571 = vmor %vm1539, %vm1563
          %vm1572 = vmor %vm1540, %vm1564
          %vm1573 = vmor %vm1541, %vm1565
          %vm1574 = vmor %vm1542, %vm1566
          %vm1575 = vmor %vm1543, %vm1567
          %vm1576 = vmor %vm1544, %vm1568
          %v1577 = vsel %vm1569, 1.0, 0.0
          %v1578 = vsel %vm1570, 1.0, 0.0
          %v1579 = vsel %vm1571, 1.0, 0.0
          %v1580 = vsel %vm1572, 1.0, 0.0
          %v1581 = vsel %vm1573, 1.0, 0.0
          %v1582 = vsel %vm1574, 1.0, 0.0
          %v1583 = vsel %vm1575, 1.0, 0.0
          %v1584 = vsel %vm1576, 1.0, 0.0
          %v1585 = vmul.f32 %v1577, %v473
          %v1586 = vmul.f32 %v1578, %v478
          %v1587 = vmul.f32 %v1579, %v483
          %v1588 = vmul.f32 %v1580, %v488
          %v1589 = vmul.f32 %v1581, %v493
          %v1590 = vmul.f32 %v1582, %v498
          %v1591 = vmul.f32 %v1583, %v503
          %v1592 = vmul.f32 %v1584, %v508
          %v1593 = vsel %vm557, %v1585, 0.0
          %v1594 = vsel %vm557, %v1586, 0.0
          %v1595 = vadd.f32 %v1593, %v1594
          %v1596 = vsel %vm557, %v1587, 0.0
          %v1597 = vadd.f32 %v1595, %v1596
          %v1598 = vsel %vm557, %v1588, 0.0
          %v1599 = vadd.f32 %v1597, %v1598
          %v1600 = vsel %vm557, %v1589, 0.0
          %v1601 = vadd.f32 %v1599, %v1600
          %v1602 = vsel %vm557, %v1590, 0.0
          %v1603 = vadd.f32 %v1601, %v1602
          %v1604 = vsel %vm557, %v1591, 0.0
          %v1605 = vadd.f32 %v1603, %v1604
          %v1606 = vsel %vm557, %v1592, 0.0
          %v1607 = vadd.f32 %v1605, %v1606
          %v1608 = vrot.slane %v1607, 4
          %v1609 = vadd.f32 %v1607, %v1608
          %v1610 = vrot.slane %v1609, 2
          %v1611 = vadd.f32 %v1609, %v1610
          %v1612 = vrot.slane %v1611, 1
          %v1613 = vadd.f32 %v1611, %v1612
          %vm1614 = vcmp.lt.f32.partialorder %v1515, 16.0
          %vm1615 = vcmp.lt.f32.partialorder %v1518, 16.0
          %vm1616 = vcmp.lt.f32.partialorder %v1521, 16.0
          %vm1617 = vcmp.lt.f32.partialorder %v1524, 16.0
          %vm1618 = vcmp.lt.f32.partialorder %v1527, 16.0
          %vm1619 = vcmp.lt.f32.partialorder %v1530, 16.0
          %vm1620 = vcmp.lt.f32.partialorder %v1533, 16.0
          %vm1621 = vcmp.lt.f32.partialorder %v1536, 16.0
          %v1622 = vsel %vm1614, 1.0, 0.0
          %v1623 = vsel %vm1615, 1.0, 0.0
          %v1624 = vsel %vm1616, 1.0, 0.0
          %v1625 = vsel %vm1617, 1.0, 0.0
          %v1626 = vsel %vm1618, 1.0, 0.0
          %v1627 = vsel %vm1619, 1.0, 0.0
          %v1628 = vsel %vm1620, 1.0, 0.0
          %v1629 = vsel %vm1621, 1.0, 0.0
          %v1630 = vmul.f32 %v354, %v1622
          %v1631 = vmul.f32 %v355, %v1623
          %v1632 = vmul.f32 %v356, %v1624
          %v1633 = vmul.f32 %v357, %v1625
          %v1634 = vmul.f32 %v358, %v1626
          %v1635 = vmul.f32 %v359, %v1627
          %v1636 = vmul.f32 %v360, %v1628
          %v1637 = vmul.f32 %v361, %v1629
          %vm1638 = vcmp.lt.f32.partialorder %v1613, 16.0
          %v1639 = vsel %vm1638, 1.0, 0.0
          %v1640 = vmul.f32 %v363, %v1639
          %s1641 = scalar_lea.vmem [#allocation4], 128
          %vm1642 = vcmask 7168
          %1643 = vst.msk [vmem:[%s1641] sm:$0xff] %vm1642, %v1630
          %1644 = vst.msk [vmem:[%s1641 + $0x8] sm:$0xff] %vm1642, %v1631
          %1645 = vst.msk [vmem:[%s1641 + $0x10] sm:$0xff] %vm1642, %v1632
          %1646 = vst.msk [vmem:[%s1641 + $0x18] sm:$0xff] %vm1642, %v1633
          %1647 = vst.msk [vmem:[%s1641 + $0x20] sm:$0xff] %vm1642, %v1634
          %1648 = vst.msk [vmem:[%s1641 + $0x28] sm:$0xff] %vm1642, %v1635
          %1649 = vst.msk [vmem:[%s1641 + $0x30] sm:$0xff] %vm1642, %v1636
          %1650 = vst.msk [vmem:[%s1641 + $0x38] sm:$0xff] %vm1642, %v1637
          %s1651 = scalar_lea.vmem [#allocation5], 2
          %vm1652 = vcmask 516096
          %1653 = vst.msk [vmem:[%s1651] sm:$0x1] %vm1652, %v1640
          %v1654 = vmul.f32 %v990, %v1401
          %v1655 = vmul.f32 %v991, %v1402
          %v1656 = vmul.f32 %v992, %v1403
          %v1657 = vmul.f32 %v993, %v1404
          %v1658 = vmul.f32 %v994, %v1405
          %v1659 = vmul.f32 %v995, %v1406
          %v1660 = vmul.f32 %v996, %v1407
          %v1661 = vmul.f32 %v997, %v1408
          %1663 = vset.pattern.permute.xlu0 0
          %1664 = vperm.xlu0 %1663, %v1630
          %v1665 = vpop.permute.xlu0 %1664
          %1668 = vset.pattern.permute.xlu0 0
          %1669 = vperm.xlu0 %1668, %v1631
          %v1670 = vpop.permute.xlu0 %1669
          %1673 = vset.pattern.permute.xlu0 0
          %1674 = vperm.xlu0 %1673, %v1632
          %v1675 = vpop.permute.xlu0 %1674
          %1678 = vset.pattern.permute.xlu0 0
          %1679 = vperm.xlu0 %1678, %v1633
          %v1680 = vpop.permute.xlu0 %1679
          %1683 = vset.pattern.permute.xlu0 0
          %1684 = vperm.xlu0 %1683, %v1634
          %v1685 = vpop.permute.xlu0 %1684
          %1688 = vset.pattern.permute.xlu0 0
          %1689 = vperm.xlu0 %1688, %v1635
          %v1690 = vpop.permute.xlu0 %1689
          %1693 = vset.pattern.permute.xlu0 0
          %1694 = vperm.xlu0 %1693, %v1636
          %v1695 = vpop.permute.xlu0 %1694
          %1698 = vset.pattern.permute.xlu0 0
          %1699 = vperm.xlu0 %1698, %v1637
          %v1700 = vpop.permute.xlu0 %1699
          %v1702 = vmul.f32 %v1665, %v1654
          %v1703 = vmul.f32 %v1670, %v1655
          %v1704 = vmul.f32 %v1675, %v1656
          %v1705 = vmul.f32 %v1680, %v1657
          %v1706 = vmul.f32 %v1685, %v1658
          %v1707 = vmul.f32 %v1690, %v1659
          %v1708 = vmul.f32 %v1695, %v1660
          %v1709 = vmul.f32 %v1700, %v1661
          %1710 = vst [vmem:[#allocation2] sm:$0xff] %v1702
          %1711 = vst [vmem:[#allocation2 + $0x8] sm:$0xff] %v1703
          %1712 = vst [vmem:[#allocation2 + $0x10] sm:$0xff] %v1704
          %1713 = vst [vmem:[#allocation2 + $0x18] sm:$0xff] %v1705
          %1714 = vst [vmem:[#allocation2 + $0x20] sm:$0xff] %v1706
          %1715 = vst [vmem:[#allocation2 + $0x28] sm:$0xff] %v1707
          %1716 = vst [vmem:[#allocation2 + $0x30] sm:$0xff] %v1708
          %1717 = vst [vmem:[#allocation2 + $0x38] sm:$0xff] %v1709
        $region56: #{graph_unet_forward.1} parent=39 // pred_fallthru
          _
        %p1718 = scmp.eq.s32.totalorder %s19, 2
        // Predicated region
        $region57: #{graph_unet_forward.1} parent=39 // pred_check
          %p1719 = pneg %p1718
        $region58: #{graph_unet_forward.1} parent=39 // pred_check_branch
          %1721 = sbr.rel (%p1719) target = $region60
        $region59: #{graph_unet_forward.1} parent=39 // pred_region
          %s1722 = scalar_lea.vmem [#allocation3], 128
          %1723 = vst [vmem:[%s1722] sm:$0xff] %v990
          %1724 = vst [vmem:[%s1722 + $0x8] sm:$0xff] %v991
          %1725 = vst [vmem:[%s1722 + $0x10] sm:$0xff] %v992
          %1726 = vst [vmem:[%s1722 + $0x18] sm:$0xff] %v993
          %1727 = vst [vmem:[%s1722 + $0x20] sm:$0xff] %v994
          %1728 = vst [vmem:[%s1722 + $0x28] sm:$0xff] %v995
          %1729 = vst [vmem:[%s1722 + $0x30] sm:$0xff] %v996
          %1730 = vst [vmem:[%s1722 + $0x38] sm:$0xff] %v997
          %v1731 = vld [vmem:[%s257] sm:$0x1]
          %v1733 = vlaneseq
          %v1734 = vshrl.u32 %v1733, 7
          %v1735 = vsub.s32 0, %v1734
          %v1736 = vrot.slane %v1731, %v1735
          %v1738 = vmul.f32 %v990, %v1736
          %v1739 = vmul.f32 %v991, %v1736
          %v1740 = vmul.f32 %v992, %v1736
          %v1741 = vmul.f32 %v993, %v1736
          %v1742 = vmul.f32 %v994, %v1736
          %v1743 = vmul.f32 %v995, %v1736
          %v1744 = vmul.f32 %v996, %v1736
          %v1745 = vmul.f32 %v997, %v1736
          %1746 = vadd.xlane.f32.xlu0 %v1738
          %v1747 = vpop.xlane.xlu0 %1746
          %1748 = vadd.xlane.f32.xlu0 %v1739
          %v1749 = vpop.xlane.xlu0 %1748
          %1750 = vadd.xlane.f32.xlu0 %v1740
          %v1751 = vpop.xlane.xlu0 %1750
          %1752 = vadd.xlane.f32.xlu0 %v1741
          %v1753 = vpop.xlane.xlu0 %1752
          %1754 = vadd.xlane.f32.xlu0 %v1742
          %v1755 = vpop.xlane.xlu0 %1754
          %1756 = vadd.xlane.f32.xlu0 %v1743
          %v1757 = vpop.xlane.xlu0 %1756
          %1758 = vadd.xlane.f32.xlu0 %v1744
          %v1759 = vpop.xlane.xlu0 %1758
          %1760 = vadd.xlane.f32.xlu0 %v1745
          %v1761 = vpop.xlane.xlu0 %1760
          %v1762 = vtanh.pop %v1747
          %v1763 = vtanh.pop %v1749
          %v1764 = vtanh.pop %v1751
          %v1765 = vtanh.pop %v1753
          %v1766 = vtanh.pop %v1755
          %v1767 = vtanh.pop %v1757
          %v1768 = vtanh.pop %v1759
          %v1769 = vtanh.pop %v1761
          %v1770 = vlaneseq
          %v1771 = vshrl.u32 %v1770, 7
          %v1772 = vadd.s32 %v1771, 8
          %v1773 = vadd.s32 %v1771, 16
          %v1774 = vadd.s32 %v1771, 24
          %v1775 = vadd.s32 %v1771, 32
          %v1776 = vadd.s32 %v1771, 40
          %v1777 = vadd.s32 %v1771, 48
          %v1778 = vadd.s32 %v1771, 56
          %v1779 = vlaneseq
          %v1780 = vand.u32 %v1779, 127
          %vm1781 = vcmp.eq.s32.totalorder %v1771, %v1780
          %vm1782 = vcmp.eq.s32.totalorder %v1772, %v1780
          %vm1783 = vcmp.eq.s32.totalorder %v1773, %v1780
          %vm1784 = vcmp.eq.s32.totalorder %v1774, %v1780
          %vm1785 = vcmp.eq.s32.totalorder %v1775, %v1780
          %vm1786 = vcmp.eq.s32.totalorder %v1776, %v1780
          %vm1787 = vcmp.eq.s32.totalorder %v1777, %v1780
          %vm1788 = vcmp.eq.s32.totalorder %v1778, %v1780
          %v1789 = vsel %vm1781, %v1762, 0.0
          %v1790 = vsel %vm1782, %v1763, 0.0
          %v1791 = vsel %vm1783, %v1764, 0.0
          %v1792 = vsel %vm1784, %v1765, 0.0
          %v1793 = vsel %vm1785, %v1766, 0.0
          %v1794 = vsel %vm1786, %v1767, 0.0
          %v1795 = vsel %vm1787, %v1768, 0.0
          %v1796 = vsel %vm1788, %v1769, 0.0
          %v1797 = vsel %vm557, %v1789, 0.0
          %v1798 = vsel %vm557, %v1790, 0.0
          %v1799 = vadd.f32 %v1797, %v1798
          %v1800 = vsel %vm557, %v1791, 0.0
          %v1801 = vadd.f32 %v1799, %v1800
          %v1802 = vsel %vm557, %v1792, 0.0
          %v1803 = vadd.f32 %v1801, %v1802
          %v1804 = vsel %vm557, %v1793, 0.0
          %v1805 = vadd.f32 %v1803, %v1804
          %v1806 = vsel %vm557, %v1794, 0.0
          %v1807 = vadd.f32 %v1805, %v1806
          %v1808 = vsel %vm557, %v1795, 0.0
          %v1809 = vadd.f32 %v1807, %v1808
          %v1810 = vsel %vm557, %v1796, 0.0
          %v1811 = vadd.f32 %v1809, %v1810
          %v1812 = vrot.slane %v1811, 4
          %v1813 = vadd.f32 %v1811, %v1812
          %v1814 = vrot.slane %v1813, 2
          %v1815 = vadd.f32 %v1813, %v1814
          %v1816 = vrot.slane %v1815, 1
          %v1817 = vadd.f32 %v1815, %v1816
          %vm1818 = vcmp.gt.f32.partialorder %v1817, %v1762
          %vm1819 = vcmp.gt.f32.partialorder %v1817, %v1763
          %vm1820 = vcmp.gt.f32.partialorder %v1817, %v1764
          %vm1821 = vcmp.gt.f32.partialorder %v1817, %v1765
          %vm1822 = vcmp.gt.f32.partialorder %v1817, %v1766
          %vm1823 = vcmp.gt.f32.partialorder %v1817, %v1767
          %vm1824 = vcmp.gt.f32.partialorder %v1817, %v1768
          %vm1825 = vcmp.gt.f32.partialorder %v1817, %v1769
          %vm1826 = vcmp.eq.f32.partialorder %v1817, %v1762
          %vm1827 = vcmp.eq.f32.partialorder %v1817, %v1763
          %vm1828 = vcmp.eq.f32.partialorder %v1817, %v1764
          %vm1829 = vcmp.eq.f32.partialorder %v1817, %v1765
          %vm1830 = vcmp.eq.f32.partialorder %v1817, %v1766
          %vm1831 = vcmp.eq.f32.partialorder %v1817, %v1767
          %vm1832 = vcmp.eq.f32.partialorder %v1817, %v1768
          %vm1833 = vcmp.eq.f32.partialorder %v1817, %v1769
          %vm1834 = vcmp.lt.s32.totalorder %v1780, %v1771
          %vm1835 = vcmp.lt.s32.totalorder %v1780, %v1772
          %vm1836 = vcmp.lt.s32.totalorder %v1780, %v1773
          %vm1837 = vcmp.lt.s32.totalorder %v1780, %v1774
          %vm1838 = vcmp.lt.s32.totalorder %v1780, %v1775
          %vm1839 = vcmp.lt.s32.totalorder %v1780, %v1776
          %vm1840 = vcmp.lt.s32.totalorder %v1780, %v1777
          %vm1841 = vcmp.lt.s32.totalorder %v1780, %v1778
          %vm1842 = vmand %vm1826, %vm1834
          %vm1843 = vmand %vm1827, %vm1835
          %vm1844 = vmand %vm1828, %vm1836
          %vm1845 = vmand %vm1829, %vm1837
          %vm1846 = vmand %vm1830, %vm1838
          %vm1847 = vmand %vm1831, %vm1839
          %vm1848 = vmand %vm1832, %vm1840
          %vm1849 = vmand %vm1833, %vm1841
          %vm1850 = vmor %vm1818, %vm1842
          %vm1851 = vmor %vm1819, %vm1843
          %vm1852 = vmor %vm1820, %vm1844
          %vm1853 = vmor %vm1821, %vm1845
          %vm1854 = vmor %vm1822, %vm1846
          %vm1855 = vmor %vm1823, %vm1847
          %vm1856 = vmor %vm1824, %vm1848
          %vm1857 = vmor %vm1825, %vm1849
          %v1858 = vsel %vm1850, 1.0, 0.0
          %v1859 = vsel %vm1851, 1.0, 0.0
          %v1860 = vsel %vm1852, 1.0, 0.0
          %v1861 = vsel %vm1853, 1.0, 0.0
          %v1862 = vsel %vm1854, 1.0, 0.0
          %v1863 = vsel %vm1855, 1.0, 0.0
          %v1864 = vsel %vm1856, 1.0, 0.0
          %v1865 = vsel %vm1857, 1.0, 0.0
          %v1866 = vmul.f32 %v1858, %v547
          %v1867 = vmul.f32 %v1859, %v547
          %v1868 = vmul.f32 %v1860, %v547
          %v1869 = vmul.f32 %v1861, %v547
          %v1870 = vmul.f32 %v1862, %v547
          %v1871 = vmul.f32 %v1863, %v547
          %v1872 = vmul.f32 %v1864, %v547
          %v1873 = vmul.f32 %v1865, %v547
          %v1874 = vsel %vm557, %v1866, 0.0
          %1875 = vadd.xlane.f32.xlu0 %v1874
          %v1876 = vpop.xlane.xlu0 %1875
          %v1877 = vsel %vm557, %v1867, 0.0
          %1878 = vadd.xlane.f32.xlu0 %v1877
          %v1879 = vpop.xlane.xlu0 %1878
          %v1880 = vsel %vm557, %v1868, 0.0
          %1881 = vadd.xlane.f32.xlu0 %v1880
          %v1882 = vpop.xlane.xlu0 %1881
          %v1883 = vsel %vm557, %v1869, 0.0
          %1884 = vadd.xlane.f32.xlu0 %v1883
          %v1885 = vpop.xlane.xlu0 %1884
          %v1886 = vsel %vm557, %v1870, 0.0
          %1887 = vadd.xlane.f32.xlu0 %v1886
          %v1888 = vpop.xlane.xlu0 %1887
          %v1889 = vsel %vm557, %v1871, 0.0
          %1890 = vadd.xlane.f32.xlu0 %v1889
          %v1891 = vpop.xlane.xlu0 %1890
          %v1892 = vsel %vm557, %v1872, 0.0
          %1893 = vadd.xlane.f32.xlu0 %v1892
          %v1894 = vpop.xlane.xlu0 %1893
          %v1895 = vsel %vm557, %v1873, 0.0
          %1896 = vadd.xlane.f32.xlu0 %v1895
          %v1897 = vpop.xlane.xlu0 %1896
          %vm1898 = vcmp.gt.f32.partialorder %v1762, %v1817
          %vm1899 = vcmp.gt.f32.partialorder %v1763, %v1817
          %vm1900 = vcmp.gt.f32.partialorder %v1764, %v1817
          %vm1901 = vcmp.gt.f32.partialorder %v1765, %v1817
          %vm1902 = vcmp.gt.f32.partialorder %v1766, %v1817
          %vm1903 = vcmp.gt.f32.partialorder %v1767, %v1817
          %vm1904 = vcmp.gt.f32.partialorder %v1768, %v1817
          %vm1905 = vcmp.gt.f32.partialorder %v1769, %v1817
          %vm1906 = vcmp.eq.f32.partialorder %v1762, %v1817
          %vm1907 = vcmp.eq.f32.partialorder %v1763, %v1817
          %vm1908 = vcmp.eq.f32.partialorder %v1764, %v1817
          %vm1909 = vcmp.eq.f32.partialorder %v1765, %v1817
          %vm1910 = vcmp.eq.f32.partialorder %v1766, %v1817
          %vm1911 = vcmp.eq.f32.partialorder %v1767, %v1817
          %vm1912 = vcmp.eq.f32.partialorder %v1768, %v1817
          %vm1913 = vcmp.eq.f32.partialorder %v1769, %v1817
          %vm1914 = vcmp.lt.s32.totalorder %v1771, %v1780
          %vm1915 = vcmp.lt.s32.totalorder %v1772, %v1780
          %vm1916 = vcmp.lt.s32.totalorder %v1773, %v1780
          %vm1917 = vcmp.lt.s32.totalorder %v1774, %v1780
          %vm1918 = vcmp.lt.s32.totalorder %v1775, %v1780
          %vm1919 = vcmp.lt.s32.totalorder %v1776, %v1780
          %vm1920 = vcmp.lt.s32.totalorder %v1777, %v1780
          %vm1921 = vcmp.lt.s32.totalorder %v1778, %v1780
          %vm1922 = vmand %vm1906, %vm1914
          %vm1923 = vmand %vm1907, %vm1915
          %vm1924 = vmand %vm1908, %vm1916
          %vm1925 = vmand %vm1909, %vm1917
          %vm1926 = vmand %vm1910, %vm1918
          %vm1927 = vmand %vm1911, %vm1919
          %vm1928 = vmand %vm1912, %vm1920
          %vm1929 = vmand %vm1913, %vm1921
          %vm1930 = vmor %vm1898, %vm1922
          %vm1931 = vmor %vm1899, %vm1923
          %vm1932 = vmor %vm1900, %vm1924
          %vm1933 = vmor %vm1901, %vm1925
          %vm1934 = vmor %vm1902, %vm1926
          %vm1935 = vmor %vm1903, %vm1927
          %vm1936 = vmor %vm1904, %vm1928
          %vm1937 = vmor %vm1905, %vm1929
          %v1938 = vsel %vm1930, 1.0, 0.0
          %v1939 = vsel %vm1931, 1.0, 0.0
          %v1940 = vsel %vm1932, 1.0, 0.0
          %v1941 = vsel %vm1933, 1.0, 0.0
          %v1942 = vsel %vm1934, 1.0, 0.0
          %v1943 = vsel %vm1935, 1.0, 0.0
          %v1944 = vsel %vm1936, 1.0, 0.0
          %v1945 = vsel %vm1937, 1.0, 0.0
          %v1946 = vmul.f32 %v1938, %v473
          %v1947 = vmul.f32 %v1939, %v478
          %v1948 = vmul.f32 %v1940, %v483
          %v1949 = vmul.f32 %v1941, %v488
          %v1950 = vmul.f32 %v1942, %v493
          %v1951 = vmul.f32 %v1943, %v498
          %v1952 = vmul.f32 %v1944, %v503
          %v1953 = vmul.f32 %v1945, %v508
          %v1954 = vsel %vm557, %v1946, 0.0
          %v1955 = vsel %vm557, %v1947, 0.0
          %v1956 = vadd.f32 %v1954, %v1955
          %v1957 = vsel %vm557, %v1948, 0.0
          %v1958 = vadd.f32 %v1956, %v1957
          %v1959 = vsel %vm557, %v1949, 0.0
          %v1960 = vadd.f32 %v1958, %v1959
          %v1961 = vsel %vm557, %v1950, 0.0
          %v1962 = vadd.f32 %v1960, %v1961
          %v1963 = vsel %vm557, %v1951, 0.0
          %v1964 = vadd.f32 %v1962, %v1963
          %v1965 = vsel %vm557, %v1952, 0.0
          %v1966 = vadd.f32 %v1964, %v1965
          %v1967 = vsel %vm557, %v1953, 0.0
          %v1968 = vadd.f32 %v1966, %v1967
          %v1969 = vrot.slane %v1968, 4
          %v1970 = vadd.f32 %v1968, %v1969
          %v1971 = vrot.slane %v1970, 2
          %v1972 = vadd.f32 %v1970, %v1971
          %v1973 = vrot.slane %v1972, 1
          %v1974 = vadd.f32 %v1972, %v1973
          %vm1975 = vcmp.lt.f32.partialorder %v1876, 8.0
          %vm1976 = vcmp.lt.f32.partialorder %v1879, 8.0
          %vm1977 = vcmp.lt.f32.partialorder %v1882, 8.0
          %vm1978 = vcmp.lt.f32.partialorder %v1885, 8.0
          %vm1979 = vcmp.lt.f32.partialorder %v1888, 8.0
          %vm1980 = vcmp.lt.f32.partialorder %v1891, 8.0
          %vm1981 = vcmp.lt.f32.partialorder %v1894, 8.0
          %vm1982 = vcmp.lt.f32.partialorder %v1897, 8.0
          %v1983 = vsel %vm1975, 1.0, 0.0
          %v1984 = vsel %vm1976, 1.0, 0.0
          %v1985 = vsel %vm1977, 1.0, 0.0
          %v1986 = vsel %vm1978, 1.0, 0.0
          %v1987 = vsel %vm1979, 1.0, 0.0
          %v1988 = vsel %vm1980, 1.0, 0.0
          %v1989 = vsel %vm1981, 1.0, 0.0
          %v1990 = vsel %vm1982, 1.0, 0.0
          %v1991 = vmul.f32 %v354, %v1983
          %v1992 = vmul.f32 %v355, %v1984
          %v1993 = vmul.f32 %v356, %v1985
          %v1994 = vmul.f32 %v357, %v1986
          %v1995 = vmul.f32 %v358, %v1987
          %v1996 = vmul.f32 %v359, %v1988
          %v1997 = vmul.f32 %v360, %v1989
          %v1998 = vmul.f32 %v361, %v1990
          %vm1999 = vcmp.lt.f32.partialorder %v1974, 8.0
          %v2000 = vsel %vm1999, 1.0, 0.0
          %v2001 = vmul.f32 %v363, %v2000
          %s2002 = scalar_lea.vmem [#allocation4], 192
          %vm2003 = vcmask 7168
          %2004 = vst.msk [vmem:[%s2002] sm:$0xff] %vm2003, %v1991
          %2005 = vst.msk [vmem:[%s2002 + $0x8] sm:$0xff] %vm2003, %v1992
          %2006 = vst.msk [vmem:[%s2002 + $0x10] sm:$0xff] %vm2003, %v1993
          %2007 = vst.msk [vmem:[%s2002 + $0x18] sm:$0xff] %vm2003, %v1994
          %2008 = vst.msk [vmem:[%s2002 + $0x20] sm:$0xff] %vm2003, %v1995
          %2009 = vst.msk [vmem:[%s2002 + $0x28] sm:$0xff] %vm2003, %v1996
          %2010 = vst.msk [vmem:[%s2002 + $0x30] sm:$0xff] %vm2003, %v1997
          %2011 = vst.msk [vmem:[%s2002 + $0x38] sm:$0xff] %vm2003, %v1998
          %s2012 = scalar_lea.vmem [#allocation5], 3
          %vm2013 = vcmask 516096
          %2014 = vst.msk [vmem:[%s2012] sm:$0x1] %vm2013, %v2001
          %v2015 = vmul.f32 %v990, %v1762
          %v2016 = vmul.f32 %v991, %v1763
          %v2017 = vmul.f32 %v992, %v1764
          %v2018 = vmul.f32 %v993, %v1765
          %v2019 = vmul.f32 %v994, %v1766
          %v2020 = vmul.f32 %v995, %v1767
          %v2021 = vmul.f32 %v996, %v1768
          %v2022 = vmul.f32 %v997, %v1769
          %2024 = vset.pattern.permute.xlu0 0
          %2025 = vperm.xlu0 %2024, %v1991
          %v2026 = vpop.permute.xlu0 %2025
          %2029 = vset.pattern.permute.xlu0 0
          %2030 = vperm.xlu0 %2029, %v1992
          %v2031 = vpop.permute.xlu0 %2030
          %2034 = vset.pattern.permute.xlu0 0
          %2035 = vperm.xlu0 %2034, %v1993
          %v2036 = vpop.permute.xlu0 %2035
          %2039 = vset.pattern.permute.xlu0 0
          %2040 = vperm.xlu0 %2039, %v1994
          %v2041 = vpop.permute.xlu0 %2040
          %2044 = vset.pattern.permute.xlu0 0
          %2045 = vperm.xlu0 %2044, %v1995
          %v2046 = vpop.permute.xlu0 %2045
          %2049 = vset.pattern.permute.xlu0 0
          %2050 = vperm.xlu0 %2049, %v1996
          %v2051 = vpop.permute.xlu0 %2050
          %2054 = vset.pattern.permute.xlu0 0
          %2055 = vperm.xlu0 %2054, %v1997
          %v2056 = vpop.permute.xlu0 %2055
          %2059 = vset.pattern.permute.xlu0 0
          %2060 = vperm.xlu0 %2059, %v1998
          %v2061 = vpop.permute.xlu0 %2060
          %v2063 = vmul.f32 %v2026, %v2015
          %v2064 = vmul.f32 %v2031, %v2016
          %v2065 = vmul.f32 %v2036, %v2017
          %v2066 = vmul.f32 %v2041, %v2018
          %v2067 = vmul.f32 %v2046, %v2019
          %v2068 = vmul.f32 %v2051, %v2020
          %v2069 = vmul.f32 %v2056, %v2021
          %v2070 = vmul.f32 %v2061, %v2022
          %2071 = vst [vmem:[#allocation2] sm:$0xff] %v2063
          %2072 = vst [vmem:[#allocation2 + $0x8] sm:$0xff] %v2064
          %2073 = vst [vmem:[#allocation2 + $0x10] sm:$0xff] %v2065
          %2074 = vst [vmem:[#allocation2 + $0x18] sm:$0xff] %v2066
          %2075 = vst [vmem:[#allocation2 + $0x20] sm:$0xff] %v2067
          %2076 = vst [vmem:[#allocation2 + $0x28] sm:$0xff] %v2068
          %2077 = vst [vmem:[#allocation2 + $0x30] sm:$0xff] %v2069
          %2078 = vst [vmem:[#allocation2 + $0x38] sm:$0xff] %v2070
        $region60: #{graph_unet_forward.1} parent=39 // pred_fallthru
          _
        %p2079 = scmp.ge.s32.totalorder %s19, 3
        // Predicated region
        $region61: #{graph_unet_forward.1} parent=39 // pred_check
          %p2080 = pneg %p2079
        $region62: #{graph_unet_forward.1} parent=39 // pred_check_branch
          %2082 = sbr.rel (%p2080) target = $region64
        $region63: #{graph_unet_forward.1} parent=39 // pred_region
          %2083 = vst [vmem:[#allocation2] sm:$0xff] %v990
          %2084 = vst [vmem:[#allocation2 + $0x8] sm:$0xff] %v991
          %2085 = vst [vmem:[#allocation2 + $0x10] sm:$0xff] %v992
          %2086 = vst [vmem:[#allocation2 + $0x18] sm:$0xff] %v993
          %2087 = vst [vmem:[#allocation2 + $0x20] sm:$0xff] %v994
          %2088 = vst [vmem:[#allocation2 + $0x28] sm:$0xff] %v995
          %2089 = vst [vmem:[#allocation2 + $0x30] sm:$0xff] %v996
          %2090 = vst [vmem:[#allocation2 + $0x38] sm:$0xff] %v997
        $region64: #{graph_unet_forward.1} parent=39 // pred_fallthru
          _
        %p2091 = scmp.eq.s32.totalorder %s19, 6
        // Predicated region
        $region65: #{graph_unet_forward.1} parent=39 // pred_check
          %p2092 = pneg %p2091
        $region66: #{graph_unet_forward.1} parent=39 // pred_check_branch
          %2094 = sbr.rel (%p2092) target = $region68
        $region67: #{graph_unet_forward.1} parent=39 // pred_region
          %v2095 = vlaneseq
          %v2096 = vand.u32 %v2095, 127
          %vm2097 = vcmp.lt.s32.totalorder %v2096, 8
          %v2098 = vsel %vm2097, %v982, -1e+30
          %v2099 = vsel %vm2097, %v983, -1e+30
          %v2100 = vsel %vm2097, %v984, -1e+30
          %v2101 = vsel %vm2097, %v985, -1e+30
          %v2102 = vsel %vm2097, %v986, -1e+30
          %v2103 = vsel %vm2097, %v987, -1e+30
          %v2104 = vsel %vm2097, %v988, -1e+30
          %v2105 = vsel %vm2097, %v989, -1e+30
          %2106 = vmax.xlane.f32.xlu0 %v2098
          %v2107 = vpop.xlane.xlu0 %2106
          %2108 = vmax.xlane.f32.xlu0 %v2099
          %v2109 = vpop.xlane.xlu0 %2108
          %2110 = vmax.xlane.f32.xlu0 %v2100
          %v2111 = vpop.xlane.xlu0 %2110
          %2112 = vmax.xlane.f32.xlu0 %v2101
          %v2113 = vpop.xlane.xlu0 %2112
          %2114 = vmax.xlane.f32.xlu0 %v2102
          %v2115 = vpop.xlane.xlu0 %2114
          %2116 = vmax.xlane.f32.xlu0 %v2103
          %v2117 = vpop.xlane.xlu0 %2116
          %2118 = vmax.xlane.f32.xlu0 %v2104
          %v2119 = vpop.xlane.xlu0 %2118
          %2120 = vmax.xlane.f32.xlu0 %v2105
          %v2121 = vpop.xlane.xlu0 %2120
          %v2122 = vsub.f32 %v2098, %v2107
          %v2123 = vsub.f32 %v2099, %v2109
          %v2124 = vsub.f32 %v2100, %v2111
          %v2125 = vsub.f32 %v2101, %v2113
          %v2126 = vsub.f32 %v2102, %v2115
          %v2127 = vsub.f32 %v2103, %v2117
          %v2128 = vsub.f32 %v2104, %v2119
          %v2129 = vsub.f32 %v2105, %v2121
          %v2130 = vmul.f32 %v2122, 1.442695
          %v2131 = vpow.pop %v2130
          %v2132 = vmul.f32 %v2123, 1.442695
          %v2133 = vpow.pop %v2132
          %v2134 = vmul.f32 %v2124, 1.442695
          %v2135 = vpow.pop %v2134
          %v2136 = vmul.f32 %v2125, 1.442695
          %v2137 = vpow.pop %v2136
          %v2138 = vmul.f32 %v2126, 1.442695
          %v2139 = vpow.pop %v2138
          %v2140 = vmul.f32 %v2127, 1.442695
          %v2141 = vpow.pop %v2140
          %v2142 = vmul.f32 %v2128, 1.442695
          %v2143 = vpow.pop %v2142
          %v2144 = vmul.f32 %v2129, 1.442695
          %v2145 = vpow.pop %v2144
          %2146 = vadd.xlane.f32.xlu0 %v2131
          %v2147 = vpop.xlane.xlu0 %2146
          %2148 = vadd.xlane.f32.xlu0 %v2133
          %v2149 = vpop.xlane.xlu0 %2148
          %2150 = vadd.xlane.f32.xlu0 %v2135
          %v2151 = vpop.xlane.xlu0 %2150
          %2152 = vadd.xlane.f32.xlu0 %v2137
          %v2153 = vpop.xlane.xlu0 %2152
          %2154 = vadd.xlane.f32.xlu0 %v2139
          %v2155 = vpop.xlane.xlu0 %2154
          %2156 = vadd.xlane.f32.xlu0 %v2141
          %v2157 = vpop.xlane.xlu0 %2156
          %2158 = vadd.xlane.f32.xlu0 %v2143
          %v2159 = vpop.xlane.xlu0 %2158
          %2160 = vadd.xlane.f32.xlu0 %v2145
          %v2161 = vpop.xlane.xlu0 %2160
          %v2162 = vlog2.pop %v2147
          %v2163 = vmul.f32 %v2162, 0.6931472
          %v2164 = vlog2.pop %v2149
          %v2165 = vmul.f32 %v2164, 0.6931472
          %v2166 = vlog2.pop %v2151
          %v2167 = vmul.f32 %v2166, 0.6931472
          %v2168 = vlog2.pop %v2153
          %v2169 = vmul.f32 %v2168, 0.6931472
          %v2170 = vlog2.pop %v2155
          %v2171 = vmul.f32 %v2170, 0.6931472
          %v2172 = vlog2.pop %v2157
          %v2173 = vmul.f32 %v2172, 0.6931472
          %v2174 = vlog2.pop %v2159
          %v2175 = vmul.f32 %v2174, 0.6931472
          %v2176 = vlog2.pop %v2161
          %v2177 = vmul.f32 %v2176, 0.6931472
          %v2178 = vadd.f32 %v2107, %v2163
          %v2179 = vadd.f32 %v2109, %v2165
          %v2180 = vadd.f32 %v2111, %v2167
          %v2181 = vadd.f32 %v2113, %v2169
          %v2182 = vadd.f32 %v2115, %v2171
          %v2183 = vadd.f32 %v2117, %v2173
          %v2184 = vadd.f32 %v2119, %v2175
          %v2185 = vadd.f32 %v2121, %v2177
          %v2186 = vsub.f32 %v2098, %v2178
          %v2187 = vsub.f32 %v2099, %v2179
          %v2188 = vsub.f32 %v2100, %v2180
          %v2189 = vsub.f32 %v2101, %v2181
          %v2190 = vsub.f32 %v2102, %v2182
          %v2191 = vsub.f32 %v2103, %v2183
          %v2192 = vsub.f32 %v2104, %v2184
          %v2193 = vsub.f32 %v2105, %v2185
          %v2194 = vsel %vm2097, %v2186, 0.0
          %v2195 = vsel %vm2097, %v2187, 0.0
          %v2196 = vsel %vm2097, %v2188, 0.0
          %v2197 = vsel %vm2097, %v2189, 0.0
          %v2198 = vsel %vm2097, %v2190, 0.0
          %v2199 = vsel %vm2097, %v2191, 0.0
          %v2200 = vsel %vm2097, %v2192, 0.0
          %v2201 = vsel %vm2097, %v2193, 0.0
          %2202 = vst [vmem:[%s5] sm:$0xff] %v2194
          %2203 = vst [vmem:[%s5 + $0x8] sm:$0xff] %v2195
          %2204 = vst [vmem:[%s5 + $0x10] sm:$0xff] %v2196
          %2205 = vst [vmem:[%s5 + $0x18] sm:$0xff] %v2197
          %2206 = vst [vmem:[%s5 + $0x20] sm:$0xff] %v2198
          %2207 = vst [vmem:[%s5 + $0x28] sm:$0xff] %v2199
          %2208 = vst [vmem:[%s5 + $0x30] sm:$0xff] %v2200
          %2209 = vst [vmem:[%s5 + $0x38] sm:$0xff] %v2201
        $region68: #{graph_unet_forward.1} parent=39 // pred_fallthru
          _
        // Predicated region
        $region69: #{graph_unet_forward.1} parent=39 // pred_check
          %p2210 = pneg %p152
        $region70: #{graph_unet_forward.1} parent=39 // pred_check_branch
          %2212 = sbr.rel (%p2210) target = $region72
        $region71: #{graph_unet_forward.1} parent=39 // pred_region
          _
        $region72: #{graph_unet_forward.1} parent=39 // pred_fallthru
          _
        // Predicated region
        $region73: #{graph_unet_forward.1} parent=39 // pred_check
          %p2213 = pneg %p152
        $region74: #{graph_unet_forward.1} parent=39 // pred_check_branch
          %2215 = sbr.rel (%p2213) target = $region76
        $region75: #{graph_unet_forward.1} parent=39 // pred_region
          _
        $region76: #{graph_unet_forward.1} parent=39 // pred_fallthru
          _
      $region40: #{graph_unet_forward.1} parent=5 // pred_fallthru
        _
      %p2216 = scmp.le.s32.totalorder 2, %s14
      // Predicated region
      $region77: #{graph_unet_forward.1} parent=5 // pred_check
        %p2217 = pneg %p2216
      $region78: #{graph_unet_forward.1} parent=5 // pred_check_branch
        %2219 = sbr.rel (%p2217) target = $region80
      $region79: #{graph_unet_forward.1} parent=5 // pred_region
        %s2220 = ssub.s32 %s14, 2
      $region80: #{graph_unet_forward.1} parent=5 // pred_fallthru
        _
    $region6: #{graph_unet_forward.1} parent=1 // loop_footer
      %s18 = sadd.s32 1, %s14
    $region7: #{graph_unet_forward.1} parent=1 // loop_footer_branch
      %13 = sbr.rel target = $region3
    $region8: #{graph_unet_forward.1} parent=1 // loop_exit
      _
    %2221 = vsyncpa [#allocation7], 1
    %s2222 = scalar_lea.sflag [#allocation7], 1
    %2223 = vsyncpa %s2222, 1

</llo_original>
